<compile_context>
chip_gen: v6e
topology: v6e:2x2x1
jax: 0.10.0
libtpu: 0.0.40
codegen_flags: <defaults>
</compile_context>

<pallas_src>
import jax
import jax.numpy as jnp
from jax.experimental import pallas as pl
from jax.experimental.pallas import tpu as pltpu

PRE_CHANNEL = 256
MID_CHANNELS = 256
BN_EPS = 1e-5
MAX_TILE_N = 512

# Packed parameter-row layout (rows of the (10, 256) f32 "pvec" operand).
ROW_SCALE_A, ROW_BIAS_A = 0, 1
ROW_SCALE_B, ROW_BIAS_B = 2, 3
ROW_SCALE_S, ROW_BIAS_S = 4, 5
ROW_GDELTA_A, ROW_GDELTA_B = 6, 7
ROW_GBIAS_A, ROW_GBIAS_B = 8, 9       # bias delta broadcast across the row


def last_block_kernel(xa_ref, xb_ref, xs_ref,   # (tn, 256) f32 inputs
                      w_ref,                     # (3, 256, 256) bf16 expert weights (resident)
                      p_ref,                     # (10, 256) f32 packed scales/biases/gates (resident)
                      oa_ref, ob_ref):           # (tn, 256) f32 outputs
    xa = xa_ref[...]
    xb = xb_ref[...]
    xs = xs_ref[...]

    # Expert branches: bf16 MXU matmul (f32 accumulation) -> folded BN -> ReLU.
    ea = jnp.dot(xa.astype(jnp.bfloat16), w_ref[0],
                 preferred_element_type=jnp.float32)
    ea = jnp.maximum(ea * p_ref[ROW_SCALE_A:ROW_SCALE_A + 1, :]
                     + p_ref[ROW_BIAS_A:ROW_BIAS_A + 1, :], 0.0)

    eb = jnp.dot(xb.astype(jnp.bfloat16), w_ref[1],
                 preferred_element_type=jnp.float32)
    eb = jnp.maximum(eb * p_ref[ROW_SCALE_B:ROW_SCALE_B + 1, :]
                     + p_ref[ROW_BIAS_B:ROW_BIAS_B + 1, :], 0.0)

    es = jnp.dot(xs.astype(jnp.bfloat16), w_ref[2],
                 preferred_element_type=jnp.float32)
    es = jnp.maximum(es * p_ref[ROW_SCALE_S:ROW_SCALE_S + 1, :]
                     + p_ref[ROW_BIAS_S:ROW_BIAS_S + 1, :], 0.0)

    # 2-way softmax([g0, g1]) == (sigmoid(g0 - g1), 1 - sigmoid(g0 - g1)).
    # Logit difference via VPU multiply + XLU lane reduction in f32 (no MXU).
    da = (jnp.sum(xa * p_ref[ROW_GDELTA_A:ROW_GDELTA_A + 1, :],
                  axis=-1, keepdims=True)
          + p_ref[ROW_GBIAS_A:ROW_GBIAS_A + 1, 0:1])
    db = (jnp.sum(xb * p_ref[ROW_GDELTA_B:ROW_GDELTA_B + 1, :],
                  axis=-1, keepdims=True)
          + p_ref[ROW_GBIAS_B:ROW_GBIAS_B + 1, 0:1])
    wa0 = 1.0 / (1.0 + jnp.exp(-da))     # weight of expert_a
    wb0 = 1.0 / (1.0 + jnp.exp(-db))     # weight of expert_b

    oa_ref[...] = ea * wa0 + es * (1.0 - wa0)
    ob_ref[...] = eb * wb0 + es * (1.0 - wb0)


def _round_up(x, m):
    return ((x + m - 1) // m) * m


def _pick_tile_n(n):
    """Biggest useful batch tile, capped so the grid has >=2 steps when possible."""
    if n <= 8:
        return 8
    tile = min(MAX_TILE_N, _round_up((n + 1) // 2, 8))
    return max(8, tile)


def last_block_forward(x_a, x_b, x_share, params, *, tile_n=None):
    n, c = x_a.shape
    assert c == PRE_CHANNEL, "LastBlock expects 256-channel inputs"
    if tile_n is None:
        tile_n = _pick_tile_n(n)
    n_pad = _round_up(n, tile_n)
    if n_pad != n:
        pad = ((0, n_pad - n), (0, 0))
        x_a = jnp.pad(x_a, pad)
        x_b = jnp.pad(x_b, pad)
        x_share = jnp.pad(x_share, pad)

    row_spec = pl.BlockSpec((tile_n, c), lambda i: (i, 0))
    w_spec = pl.BlockSpec((3, c, MID_CHANNELS), lambda i: (0, 0, 0))
    p_spec = pl.BlockSpec((10, MID_CHANNELS), lambda i: (0, 0))

    grid_spec = pltpu.PrefetchScalarGridSpec(
        num_scalar_prefetch=0,
        grid=(n_pad // tile_n,),
        in_specs=[row_spec, row_spec, row_spec,   # x_a, x_b, x_share
                  w_spec,                          # stacked expert weights (bf16)
                  p_spec],                         # packed scales/biases/gates (f32)
        out_specs=[row_spec, row_spec],
    )

    out_shape = (
        jax.ShapeDtypeStruct((n_pad, MID_CHANNELS), jnp.float32),
        jax.ShapeDtypeStruct((n_pad, MID_CHANNELS), jnp.float32),
    )

    oa, ob = pl.pallas_call(
        last_block_kernel,
        out_shape=out_shape,
        grid_spec=grid_spec,
        compiler_params=pltpu.CompilerParams(
            dimension_semantics=("parallel",)),
    )(x_a, x_b, x_share, params["w_stack"], params["pvec"])
    return oa[:n], ob[:n]


def _xavier_normal(key, shape):
    fan_out, fan_in = shape  # PyTorch Linear weight is (out, in)
    std = (2.0 / (fan_in + fan_out)) ** 0.5
    return std * jax.random.normal(key, shape, dtype=jnp.float32)


def make_params(key):
    ks = jax.random.split(key, 19)

    def folded_bn(k0, k1, k2, k3):
        gamma = jax.random.uniform(k0, (MID_CHANNELS,), minval=0.5, maxval=1.5)
        beta = 0.1 * jax.random.normal(k1, (MID_CHANNELS,))
        mean = 0.1 * jax.random.normal(k2, (MID_CHANNELS,))
        var = jax.random.uniform(k3, (MID_CHANNELS,), minval=0.5, maxval=1.5)
        scale = gamma * jax.lax.rsqrt(var + BN_EPS)
        bias = beta - mean * scale
        return (scale.reshape(1, -1).astype(jnp.float32),
                bias.reshape(1, -1).astype(jnp.float32))

    wa = _xavier_normal(ks[0], (MID_CHANNELS, PRE_CHANNEL))
    wb = _xavier_normal(ks[1], (MID_CHANNELS, PRE_CHANNEL))
    ws = _xavier_normal(ks[2], (MID_CHANNELS, PRE_CHANNEL))
    gwa = _xavier_normal(ks[3], (2, MID_CHANNELS))
    gwb = _xavier_normal(ks[4], (2, MID_CHANNELS))
    gba = 0.1 * jax.random.normal(ks[5], (2,), dtype=jnp.float32)
    gbb = 0.1 * jax.random.normal(ks[6], (2,), dtype=jnp.float32)

    sa, ba = folded_bn(ks[7], ks[8], ks[9], ks[10])
    sb, bb = folded_bn(ks[11], ks[12], ks[13], ks[14])
    ss, bs = folded_bn(ks[15], ks[16], ks[17], ks[18])

    # Packed, kernel-ready operands.
    w_stack = jnp.stack([wa.T, wb.T, ws.T], axis=0).astype(jnp.bfloat16)
    pvec = jnp.concatenate(
        [sa, ba, sb, bb, ss, bs,
         (gwa[0] - gwa[1]).reshape(1, -1),
         (gwb[0] - gwb[1]).reshape(1, -1),
         jnp.broadcast_to(gba[0] - gba[1], (1, MID_CHANNELS)),
         jnp.broadcast_to(gbb[0] - gbb[1], (1, MID_CHANNELS))],
        axis=0).astype(jnp.float32)                     # (10, 256)

    kernel_params = {"w_stack": w_stack, "pvec": pvec}
    ref_params = {
        "wa": wa, "wb": wb, "ws": ws,
        "gwa": gwa, "gba": gba, "gwb": gwb, "gbb": gbb,
        "scale_a": sa, "bias_a": ba,
        "scale_b": sb, "bias_b": bb,
        "scale_s": ss, "bias_s": bs,
    }
    return kernel_params, ref_params


def reference_forward_f32(x_a, x_b, x_share, r):
    """Pure-f32 reference with the original Linear->BN->ReLU / softmax form."""
    def expert(x, w, s, b):
        return jnp.maximum((x @ w.T) * s + b, 0.0)

    ea = expert(x_a, r["wa"], r["scale_a"], r["bias_a"])
    eb = expert(x_b, r["wb"], r["scale_b"], r["bias_b"])
    es = expert(x_share, r["ws"], r["scale_s"], r["bias_s"])
    wa = jax.nn.softmax(x_a @ r["gwa"].T + r["gba"], axis=1)
    wb = jax.nn.softmax(x_b @ r["gwb"].T + r["gbb"], axis=1)
    oa = ea * wa[:, 0:1] + es * wa[:, 1:2]
    ob = eb * wb[:, 0:1] + es * wb[:, 1:2]
    return oa, ob


def reference_forward_matched(x_a, x_b, x_share, kp):
    """Pure-JAX reference using the same bf16 / sigmoid-of-difference math as the kernel."""
    w, p = kp["w_stack"], kp["pvec"]

    def expert(x, wt, s, b):
        y = jnp.dot(x.astype(jnp.bfloat16), wt, preferred_element_type=jnp.float32)
        return jnp.maximum(y * s + b, 0.0)

    ea = expert(x_a, w[0], p[ROW_SCALE_A:ROW_SCALE_A + 1], p[ROW_BIAS_A:ROW_BIAS_A + 1])
    eb = expert(x_b, w[1], p[ROW_SCALE_B:ROW_SCALE_B + 1], p[ROW_BIAS_B:ROW_BIAS_B + 1])
    es = expert(x_share, w[2], p[ROW_SCALE_S:ROW_SCALE_S + 1], p[ROW_BIAS_S:ROW_BIAS_S + 1])
    da = (jnp.sum(x_a * p[ROW_GDELTA_A:ROW_GDELTA_A + 1], axis=-1, keepdims=True)
          + p[ROW_GBIAS_A, 0])
    db = (jnp.sum(x_b * p[ROW_GDELTA_B:ROW_GDELTA_B + 1], axis=-1, keepdims=True)
          + p[ROW_GBIAS_B, 0])
    wa0 = 1.0 / (1.0 + jnp.exp(-da))
    wb0 = 1.0 / (1.0 + jnp.exp(-db))
    oa = ea * wa0 + es * (1.0 - wa0)
    ob = eb * wb0 + es * (1.0 - wb0)
    return oa, ob


if __name__ == "__main__":
    key = jax.random.PRNGKey(0)
    k_param, k_a, k_b, k_s = jax.random.split(key, 4)

    # RoI count deliberately NOT a multiple of the tile: exercises padding and
    # produces a 2-step grid (megacore / both v7x TensorCores get work).
    N = 200
    kernel_params, ref_params = make_params(k_param)
    x_a = jax.random.normal(k_a, (N, PRE_CHANNEL), dtype=jnp.float32)
    x_b = jax.random.normal(k_b, (N, PRE_CHANNEL), dtype=jnp.float32)
    x_share = jax.random.normal(k_s, (N, PRE_CHANNEL), dtype=jnp.float32)

    out_a, out_b = last_block_forward(x_a, x_b, x_share, kernel_params)
    jax.block_until_ready((out_a, out_b))

    # Tight check against a pure-JAX reference using the exact kernel math.
    m_a, m_b = reference_forward_matched(x_a, x_b, x_share, kernel_params)
    assert jnp.allclose(out_a, m_a, atol=2e-3, rtol=2e-3)
    assert jnp.allclose(out_b, m_b, atol=2e-3, rtol=2e-3)

    # Loose check against the full-f32 PyTorch-equivalent math (bf16 matmul tolerance).
    r_a, r_b = reference_forward_f32(x_a, x_b, x_share, ref_params)
    assert jnp.allclose(out_a, r_a, atol=5e-2, rtol=5e-2)
    assert jnp.allclose(out_b, r_b, atol=5e-2, rtol=5e-2)

    print("KERNEL_OK")
</pallas_src>

<mosaic_0001>
module attributes {stable_mosaic.version = 11 : i64} {
  func.func @last_block_kernel(%arg0: i32, %arg1: memref<104x256xf32, #tpu.memory_space<vmem>>, %arg2: memref<104x256xf32, #tpu.memory_space<vmem>>, %arg3: memref<104x256xf32, #tpu.memory_space<vmem>>, %arg4: memref<3x256x256xbf16, #tpu.memory_space<vmem>>, %arg5: memref<10x256xf32, #tpu.memory_space<vmem>>, %arg6: memref<104x256xf32, #tpu.memory_space<vmem>>, %arg7: memref<104x256xf32, #tpu.memory_space<vmem>>) attributes {dimension_semantics = [#tpu.dimension_semantics<parallel>], iteration_bounds = array<i64: 2>, scalar_prefetch = 0 : i64, scratch_operands = 0 : i64, tpu.core_type = #tpu.core_type<tc>, window_params = [{transform_indices = @transform_0, window_bounds = array<i64: 104, 256>}, {transform_indices = @transform_1, window_bounds = array<i64: 104, 256>}, {transform_indices = @transform_2, window_bounds = array<i64: 104, 256>}, {pipeline_mode = #tpu.pipeline_mode<synchronous>, transform_indices = @transform_3, window_bounds = array<i64: 3, 256, 256>}, {pipeline_mode = #tpu.pipeline_mode<synchronous>, transform_indices = @transform_4, window_bounds = array<i64: 10, 256>}, {transform_indices = @transform_5, window_bounds = array<i64: 104, 256>}, {transform_indices = @transform_6, window_bounds = array<i64: 104, 256>}]} {
    %c0 = arith.constant 0 : index
    %c0_0 = arith.constant 0 : index
    %0 = vector.load %arg1[%c0, %c0_0] : memref<104x256xf32, #tpu.memory_space<vmem>>, vector<104x256xf32>
    %c0_1 = arith.constant 0 : index
    %c0_2 = arith.constant 0 : index
    %1 = vector.load %arg2[%c0_1, %c0_2] : memref<104x256xf32, #tpu.memory_space<vmem>>, vector<104x256xf32>
    %c0_3 = arith.constant 0 : index
    %c0_4 = arith.constant 0 : index
    %2 = vector.load %arg3[%c0_3, %c0_4] : memref<104x256xf32, #tpu.memory_space<vmem>>, vector<104x256xf32>
    %3 = arith.truncf %0 : vector<104x256xf32> to vector<104x256xbf16>
    %c0_5 = arith.constant 0 : index
    %c0_6 = arith.constant 0 : index
    %c0_7 = arith.constant 0 : index
    %4 = vector.load %arg4[%c0_5, %c0_6, %c0_7] : memref<3x256x256xbf16, #tpu.memory_space<vmem>>, vector<1x256x256xbf16>
    %5 = vector.shape_cast %4 : vector<1x256x256xbf16> to vector<256x256xbf16>
    %cst = arith.constant dense<0.000000e+00> : vector<104x256xf32>
    %6 = tpu.matmul %3, %5, %cst {dimension_numbers = #tpu.dot_dimension_numbers<[1], [0], [0], [1], [0, 0, 1, 1], [], []>} : vector<104x256xbf16>, vector<256x256xbf16>, vector<104x256xf32> -> vector<104x256xf32>
    %c0_8 = arith.constant 0 : index
    %c0_9 = arith.constant 0 : index
    %7 = vector.load %arg5[%c0_8, %c0_9] : memref<10x256xf32, #tpu.memory_space<vmem>>, vector<1x256xf32>
    %8 = vector.broadcast %7 : vector<1x256xf32> to vector<104x256xf32>
    %9 = arith.mulf %6, %8 : vector<104x256xf32>
    %c1 = arith.constant 1 : index
    %c0_10 = arith.constant 0 : index
    %10 = vector.load %arg5[%c1, %c0_10] : memref<10x256xf32, #tpu.memory_space<vmem>>, vector<1x256xf32>
    %11 = vector.broadcast %10 : vector<1x256xf32> to vector<104x256xf32>
    %12 = arith.addf %9, %11 : vector<104x256xf32>
    %cst_11 = arith.constant 0.000000e+00 : f32
    %13 = vector.broadcast %cst_11 : f32 to vector<104x256xf32>
    %14 = arith.maximumf %12, %13 : vector<104x256xf32>
    %15 = arith.truncf %1 : vector<104x256xf32> to vector<104x256xbf16>
    %c1_12 = arith.constant 1 : index
    %c0_13 = arith.constant 0 : index
    %c0_14 = arith.constant 0 : index
    %16 = vector.load %arg4[%c1_12, %c0_13, %c0_14] : memref<3x256x256xbf16, #tpu.memory_space<vmem>>, vector<1x256x256xbf16>
    %17 = vector.shape_cast %16 : vector<1x256x256xbf16> to vector<256x256xbf16>
    %cst_15 = arith.constant dense<0.000000e+00> : vector<104x256xf32>
    %18 = tpu.matmul %15, %17, %cst_15 {dimension_numbers = #tpu.dot_dimension_numbers<[1], [0], [0], [1], [0, 0, 1, 1], [], []>} : vector<104x256xbf16>, vector<256x256xbf16>, vector<104x256xf32> -> vector<104x256xf32>
    %c2 = arith.constant 2 : index
    %c0_16 = arith.constant 0 : index
    %19 = vector.load %arg5[%c2, %c0_16] : memref<10x256xf32, #tpu.memory_space<vmem>>, vector<1x256xf32>
    %20 = vector.broadcast %19 : vector<1x256xf32> to vector<104x256xf32>
    %21 = arith.mulf %18, %20 : vector<104x256xf32>
    %c3 = arith.constant 3 : index
    %c0_17 = arith.constant 0 : index
    %22 = vector.load %arg5[%c3, %c0_17] : memref<10x256xf32, #tpu.memory_space<vmem>>, vector<1x256xf32>
    %23 = vector.broadcast %22 : vector<1x256xf32> to vector<104x256xf32>
    %24 = arith.addf %21, %23 : vector<104x256xf32>
    %cst_18 = arith.constant 0.000000e+00 : f32
    %25 = vector.broadcast %cst_18 : f32 to vector<104x256xf32>
    %26 = arith.maximumf %24, %25 : vector<104x256xf32>
    %27 = arith.truncf %2 : vector<104x256xf32> to vector<104x256xbf16>
    %c2_19 = arith.constant 2 : index
    %c0_20 = arith.constant 0 : index
    %c0_21 = arith.constant 0 : index
    %28 = vector.load %arg4[%c2_19, %c0_20, %c0_21] : memref<3x256x256xbf16, #tpu.memory_space<vmem>>, vector<1x256x256xbf16>
    %29 = vector.shape_cast %28 : vector<1x256x256xbf16> to vector<256x256xbf16>
    %cst_22 = arith.constant dense<0.000000e+00> : vector<104x256xf32>
    %30 = tpu.matmul %27, %29, %cst_22 {dimension_numbers = #tpu.dot_dimension_numbers<[1], [0], [0], [1], [0, 0, 1, 1], [], []>} : vector<104x256xbf16>, vector<256x256xbf16>, vector<104x256xf32> -> vector<104x256xf32>
    %c4 = arith.constant 4 : index
    %c0_23 = arith.constant 0 : index
    %31 = vector.load %arg5[%c4, %c0_23] : memref<10x256xf32, #tpu.memory_space<vmem>>, vector<1x256xf32>
    %32 = vector.broadcast %31 : vector<1x256xf32> to vector<104x256xf32>
    %33 = arith.mulf %30, %32 : vector<104x256xf32>
    %c5 = arith.constant 5 : index
    %c0_24 = arith.constant 0 : index
    %34 = vector.load %arg5[%c5, %c0_24] : memref<10x256xf32, #tpu.memory_space<vmem>>, vector<1x256xf32>
    %35 = vector.broadcast %34 : vector<1x256xf32> to vector<104x256xf32>
    %36 = arith.addf %33, %35 : vector<104x256xf32>
    %cst_25 = arith.constant 0.000000e+00 : f32
    %37 = vector.broadcast %cst_25 : f32 to vector<104x256xf32>
    %38 = arith.maximumf %36, %37 : vector<104x256xf32>
    %c6 = arith.constant 6 : index
    %c0_26 = arith.constant 0 : index
    %39 = vector.load %arg5[%c6, %c0_26] : memref<10x256xf32, #tpu.memory_space<vmem>>, vector<1x256xf32>
    %40 = vector.broadcast %39 : vector<1x256xf32> to vector<104x256xf32>
    %41 = arith.mulf %0, %40 : vector<104x256xf32>
    %cst_27 = arith.constant dense<0.000000e+00> : vector<104xf32>
    %42 = vector.multi_reduction <add>, %41, %cst_27 [1] : vector<104x256xf32> to vector<104xf32>
    %43 = vector.shape_cast %42 : vector<104xf32> to vector<104x1xf32>
    %c8 = arith.constant 8 : index
    %c0_28 = arith.constant 0 : index
    %44 = vector.load %arg5[%c8, %c0_28] : memref<10x256xf32, #tpu.memory_space<vmem>>, vector<1x1xf32>
    %45 = vector.broadcast %44 : vector<1x1xf32> to vector<104x1xf32>
    %46 = arith.addf %43, %45 : vector<104x1xf32>
    %c7 = arith.constant 7 : index
    %c0_29 = arith.constant 0 : index
    %47 = vector.load %arg5[%c7, %c0_29] : memref<10x256xf32, #tpu.memory_space<vmem>>, vector<1x256xf32>
    %48 = vector.broadcast %47 : vector<1x256xf32> to vector<104x256xf32>
    %49 = arith.mulf %1, %48 : vector<104x256xf32>
    %cst_30 = arith.constant dense<0.000000e+00> : vector<104xf32>
    %50 = vector.multi_reduction <add>, %49, %cst_30 [1] : vector<104x256xf32> to vector<104xf32>
    %51 = vector.shape_cast %50 : vector<104xf32> to vector<104x1xf32>
    %c9 = arith.constant 9 : index
    %c0_31 = arith.constant 0 : index
    %52 = vector.load %arg5[%c9, %c0_31] : memref<10x256xf32, #tpu.memory_space<vmem>>, vector<1x1xf32>
    %53 = vector.broadcast %52 : vector<1x1xf32> to vector<104x1xf32>
    %54 = arith.addf %51, %53 : vector<104x1xf32>
    %cst_32 = arith.constant 0.000000e+00 : f32
    %55 = vector.broadcast %cst_32 : f32 to vector<104x1xf32>
    %56 = arith.subf %55, %46 : vector<104x1xf32>
    %57 = math.exp %56 : vector<104x1xf32>
    %cst_33 = arith.constant 1.000000e+00 : f32
    %58 = vector.broadcast %cst_33 : f32 to vector<104x1xf32>
    %59 = arith.addf %58, %57 : vector<104x1xf32>
    %cst_34 = arith.constant 1.000000e+00 : f32
    %60 = vector.broadcast %cst_34 : f32 to vector<104x1xf32>
    %61 = arith.divf %60, %59 : vector<104x1xf32>
    %cst_35 = arith.constant 0.000000e+00 : f32
    %62 = vector.broadcast %cst_35 : f32 to vector<104x1xf32>
    %63 = arith.subf %62, %54 : vector<104x1xf32>
    %64 = math.exp %63 : vector<104x1xf32>
    %cst_36 = arith.constant 1.000000e+00 : f32
    %65 = vector.broadcast %cst_36 : f32 to vector<104x1xf32>
    %66 = arith.addf %65, %64 : vector<104x1xf32>
    %cst_37 = arith.constant 1.000000e+00 : f32
    %67 = vector.broadcast %cst_37 : f32 to vector<104x1xf32>
    %68 = arith.divf %67, %66 : vector<104x1xf32>
    %69 = vector.broadcast %61 : vector<104x1xf32> to vector<104x256xf32>
    %70 = arith.mulf %14, %69 : vector<104x256xf32>
    %cst_38 = arith.constant 1.000000e+00 : f32
    %71 = vector.broadcast %cst_38 : f32 to vector<104x1xf32>
    %72 = arith.subf %71, %61 : vector<104x1xf32>
    %73 = vector.broadcast %72 : vector<104x1xf32> to vector<104x256xf32>
    %74 = arith.mulf %38, %73 : vector<104x256xf32>
    %75 = arith.addf %70, %74 : vector<104x256xf32>
    %c0_39 = arith.constant 0 : index
    %c0_40 = arith.constant 0 : index
    %76 = vector.load %arg6[%c0_39, %c0_40] : memref<104x256xf32, #tpu.memory_space<vmem>>, vector<104x256xf32>
    tpu.vector_store %arg6[%c0_39, %c0_40], %75 {strides = array<i32>} : memref<104x256xf32, #tpu.memory_space<vmem>>, vector<104x256xf32>,
    %77 = vector.broadcast %68 : vector<104x1xf32> to vector<104x256xf32>
    %78 = arith.mulf %26, %77 : vector<104x256xf32>
    %cst_41 = arith.constant 1.000000e+00 : f32
    %79 = vector.broadcast %cst_41 : f32 to vector<104x1xf32>
    %80 = arith.subf %79, %68 : vector<104x1xf32>
    %81 = vector.broadcast %80 : vector<104x1xf32> to vector<104x256xf32>
    %82 = arith.mulf %38, %81 : vector<104x256xf32>
    %83 = arith.addf %78, %82 : vector<104x256xf32>
    %c0_42 = arith.constant 0 : index
    %c0_43 = arith.constant 0 : index
    %84 = vector.load %arg7[%c0_42, %c0_43] : memref<104x256xf32, #tpu.memory_space<vmem>>, vector<104x256xf32>
    tpu.vector_store %arg7[%c0_42, %c0_43], %83 {strides = array<i32>} : memref<104x256xf32, #tpu.memory_space<vmem>>, vector<104x256xf32>,
    return
  }
  func.func @transform_0(%arg0: i32) -> (i32, i32) {
    %c0_i32 = arith.constant 0 : i32
    %c0_i32_0 = arith.constant 0 : i32
    return %arg0, %c0_i32 : i32, i32
  }
  func.func @transform_1(%arg0: i32) -> (i32, i32) {
    %c0_i32 = arith.constant 0 : i32
    %c0_i32_0 = arith.constant 0 : i32
    return %arg0, %c0_i32 : i32, i32
  }
  func.func @transform_2(%arg0: i32) -> (i32, i32) {
    %c0_i32 = arith.constant 0 : i32
    %c0_i32_0 = arith.constant 0 : i32
    return %arg0, %c0_i32 : i32, i32
  }
  func.func @transform_3(%arg0: i32) -> (i32, i32, i32) {
    %c0_i32 = arith.constant 0 : i32
    %c0_i32_0 = arith.constant 0 : i32
    %c0_i32_1 = arith.constant 0 : i32
    %c0_i32_2 = arith.constant 0 : i32
    return %c0_i32, %c0_i32_0, %c0_i32_1 : i32, i32, i32
  }
  func.func @transform_4(%arg0: i32) -> (i32, i32) {
    %c0_i32 = arith.constant 0 : i32
    %c0_i32_0 = arith.constant 0 : i32
    %c0_i32_1 = arith.constant 0 : i32
    return %c0_i32, %c0_i32_0 : i32, i32
  }
  func.func @transform_5(%arg0: i32) -> (i32, i32) {
    %c0_i32 = arith.constant 0 : i32
    %c0_i32_0 = arith.constant 0 : i32
    return %arg0, %c0_i32 : i32, i32
  }
  func.func @transform_6(%arg0: i32) -> (i32, i32) {
    %c0_i32 = arith.constant 0 : i32
    %c0_i32_0 = arith.constant 0 : i32
    return %arg0, %c0_i32 : i32, i32
  }
}

</mosaic_0001>

<llo_original>
// kernel: tpu_custom_call.1
$region0: #{tpu_custom_call.1}
  #allocation0 [shape = 'u32[]', space=smem, size = 0x4, offset = 0x4, fixed_abs, tag = 'smem constant byte address 0x4 - core index']
  #allocation1 [shape = 'u32[144,128]{1,0:T(1,128)}', space=vmem, size = 0x12000, scoped, tag = 'internal scratch']
  %s0 = inlined_call_operand.hbm [shape: f32[208,256], index: 0, kind: input, shape index: {}]
  %s1 = inlined_call_operand.hbm [shape: f32[208,256], index: 1, kind: input, shape index: {}]
  %s2 = inlined_call_operand.hbm [shape: f32[208,256], index: 2, kind: input, shape index: {}]
  %s3 = inlined_call_operand.hbm [shape: bf16[3,256,256], index: 3, kind: input, shape index: {}]
  %s4 = inlined_call_operand.hbm [shape: f32[10,256], index: 4, kind: input, shape index: {}]
  %s5 = inlined_call_operand.hbm [shape: f32[208,256], index: 5, kind: output, shape index: {0}]
  %s6 = inlined_call_operand.hbm [shape: f32[208,256], index: 6, kind: output, shape index: {1}]
  %7 = xla_tuple %s5, %s6
  %s8 = sld [smem:[#allocation0]]
  $region81: #{tpu_custom_call.1} parent=0
    _
  %s10 = ssub.s32 1, %s8
  %s11 = scalar_select 0, %s10, %s8
  $region1: #{tpu_custom_call.1} parent=0
    #allocation2 [shape = 'u8[212992]{0}', space=vmem, size = 0x34000, scoped, tag = 'input window, operand 0']
    #allocation3 [shape = 's32[2]{0}', space=sflag, size = 0x8, scoped, tag = 'scoped memory for tpu_custom_call.1']
    #allocation4 [shape = 's32[2]{0}', space=sflag, size = 0x8, scoped, tag = 'scoped memory for tpu_custom_call.1']
    #allocation5 [shape = 'u8[212992]{0}', space=vmem, size = 0x34000, scoped, tag = 'input window, operand 1']
    #allocation6 [shape = 's32[2]{0}', space=sflag, size = 0x8, scoped, tag = 'scoped memory for tpu_custom_call.1']
    #allocation7 [shape = 'u8[212992]{0}', space=vmem, size = 0x34000, scoped, tag = 'input window, operand 2']
    #allocation8 [shape = 'u8[393216]{0}', space=vmem, size = 0x60000, scoped, tag = 'input window, operand 3, single buffered']
    #allocation9 [shape = 's32[1]{0}', space=sflag, size = 0x4, scoped, tag = 'scoped memory for tpu_custom_call.1']
    #allocation10 [shape = 'u8[16384]{0}', space=vmem, size = 0x4000, scoped, tag = 'input window, operand 4, single buffered']
    #allocation11 [shape = 'u8[212992]{0}', space=vmem, size = 0x34000, scoped, tag = 'output window, operand 0']
    #allocation12 [shape = 'u8[212992]{0}', space=vmem, size = 0x34000, scoped, tag = 'output window, operand 1']
    #allocation13 [shape = 's32[2]{0}', space=sflag, size = 0x8, scoped, tag = 'scoped memory for tpu_custom_call.1']
    %12 = vsyncpa [#allocation3], 0
    %s13 = scalar_lea.sflag [#allocation3], 1
    %14 = vsyncpa %s13, 0
    %15 = vsyncpa [#allocation6], 0
    %s16 = scalar_lea.sflag [#allocation6], 1
    %17 = vsyncpa %s16, 0
    %18 = vsyncpa [#allocation9], 0
    %19 = vsyncpa [#allocation4], 0
    %s20 = scalar_lea.sflag [#allocation4], 1
    %21 = vsyncpa %s20, 0
    %22 = vsyncpa [#allocation13], 0
    %s23 = scalar_lea.sflag [#allocation13], 1
    %24 = vsyncpa %s23, 0
    loop: start=0, step=1, limit=4
    $region2: #{tpu_custom_call.1} parent=1 // loop_pre_header
      _
    $region3: #{tpu_custom_call.1} parent=1 // loop_header
      %s26 = sphi 0, %s30
      %p27 = scmp.ge.s32.totalorder %s26, 4
      %s36 = sphi 0, %s38
      %s39 = sphi 0, %s36
      %s40 = sphi 0, %s39
      %s56 = sphi 0, %s40
      %s62 = sphi 0, %s64
      %s65 = sphi 0, %s62
      %s66 = sphi 0, %s65
      %s82 = sphi 0, %s66
      %s88 = sphi 0, %s90
      %s91 = sphi 0, %s88
      %s92 = sphi 0, %s91
      %s108 = sphi 0, %s92
      %s112 = sphi 0, %s112
      %s114 = sphi 0, %s112
      %s115 = sphi 0, %s114
      %s129 = sphi 0, %s115
      %s133 = sphi 0, %s133
      %s135 = sphi 0, %s133
      %s136 = sphi 0, %s135
      %s150 = sphi 0, %s136
      %s156 = sphi 0, %s158
      %s159 = sphi 0, %s156
      %s160 = sphi 0, %s159
      %s176 = sphi 0, %s160
      %s182 = sphi 0, %s184
      %s185 = sphi 0, %s182
      %s186 = sphi 0, %s185
      %s202 = sphi 0, %s186
    $region4: #{tpu_custom_call.1} parent=1 // loop_header_branch
      %29 = sbr.rel (%p27) target = $region8
    $region5: #{tpu_custom_call.1} parent=1 // loop_body
      %s31 = ssub.s32 %s26, 1
      %s32 = ssub.s32 %s26, 2
      %s33 = sadd.s32 %s26, 1
      %s34 = ssub.s32 %s26, %s33
      %p35 = scmp.eq.s32.totalorder %s34, 0
      %s37 = sadd.s32 %s36, 1
      %s38 = scalar_select %p35, %s36, %s37
      %p41 = pneg %p35
      %p42 = scmp.eq.s32.totalorder %s26, 1
      %p43 = por %p41, %p42
      %p44 = scmp.ne.s32.totalorder %s36, %s39
      %p45 = scmp.eq.s32.totalorder %s26, 0
      %p46 = por %p44, %p45
      %p47 = scmp.ne.s32.totalorder %s36, %s39
      %p48 = scmp.eq.s32.totalorder %s31, 1
      %p49 = por %p47, %p48
      %p50 = scmp.ne.s32.totalorder %s39, %s40
      %p51 = scmp.eq.s32.totalorder %s31, 0
      %p52 = por %p50, %p51
      %p53 = scmp.ne.s32.totalorder %s39, %s40
      %p54 = scmp.eq.s32.totalorder %s32, 1
      %p55 = por %p53, %p54
      %p57 = scmp.ne.s32.totalorder %s40, %s56
      %p58 = scmp.eq.s32.totalorder %s32, 0
      %p59 = por %p57, %p58
      %s60 = ssub.s32 %s26, %s33
      %p61 = scmp.eq.s32.totalorder %s60, 0
      %s63 = sadd.s32 %s62, 1
      %s64 = scalar_select %p61, %s62, %s63
      %p67 = pneg %p61
      %p68 = scmp.eq.s32.totalorder %s26, 1
      %p69 = por %p67, %p68
      %p70 = scmp.ne.s32.totalorder %s62, %s65
      %p71 = scmp.eq.s32.totalorder %s26, 0
      %p72 = por %p70, %p71
      %p73 = scmp.ne.s32.totalorder %s62, %s65
      %p74 = scmp.eq.s32.totalorder %s31, 1
      %p75 = por %p73, %p74
      %p76 = scmp.ne.s32.totalorder %s65, %s66
      %p77 = scmp.eq.s32.totalorder %s31, 0
      %p78 = por %p76, %p77
      %p79 = scmp.ne.s32.totalorder %s65, %s66
      %p80 = scmp.eq.s32.totalorder %s32, 1
      %p81 = por %p79, %p80
      %p83 = scmp.ne.s32.totalorder %s66, %s82
      %p84 = scmp.eq.s32.totalorder %s32, 0
      %p85 = por %p83, %p84
      %s86 = ssub.s32 %s26, %s33
      %p87 = scmp.eq.s32.totalorder %s86, 0
      %s89 = sadd.s32 %s88, 1
      %s90 = scalar_select %p87, %s88, %s89
      %p93 = pneg %p87
      %p94 = scmp.eq.s32.totalorder %s26, 1
      %p95 = por %p93, %p94
      %p96 = scmp.ne.s32.totalorder %s88, %s91
      %p97 = scmp.eq.s32.totalorder %s26, 0
      %p98 = por %p96, %p97
      %p99 = scmp.ne.s32.totalorder %s88, %s91
      %p100 = scmp.eq.s32.totalorder %s31, 1
      %p101 = por %p99, %p100
      %p102 = scmp.ne.s32.totalorder %s91, %s92
      %p103 = scmp.eq.s32.totalorder %s31, 0
      %p104 = por %p102, %p103
      %p105 = scmp.ne.s32.totalorder %s91, %s92
      %p106 = scmp.eq.s32.totalorder %s32, 1
      %p107 = por %p105, %p106
      %p109 = scmp.ne.s32.totalorder %s92, %s108
      %p110 = scmp.eq.s32.totalorder %s32, 0
      %p111 = por %p109, %p110
      %s113 = sadd.s32 %s112, 1
      %p116 = scmp.eq.s32.totalorder %s26, 1
      %p117 = scmp.ne.s32.totalorder %s112, %s114
      %p118 = scmp.eq.s32.totalorder %s26, 0
      %p119 = por %p117, %p118
      %p120 = scmp.ne.s32.totalorder %s112, %s114
      %p121 = scmp.eq.s32.totalorder %s31, 1
      %p122 = por %p120, %p121
      %p123 = scmp.ne.s32.totalorder %s114, %s115
      %p124 = scmp.eq.s32.totalorder %s31, 0
      %p125 = por %p123, %p124
      %p126 = scmp.ne.s32.totalorder %s114, %s115
      %p127 = scmp.eq.s32.totalorder %s32, 1
      %p128 = por %p126, %p127
      %p130 = scmp.ne.s32.totalorder %s115, %s129
      %p131 = scmp.eq.s32.totalorder %s32, 0
      %p132 = por %p130, %p131
      %s134 = sadd.s32 %s133, 1
      %p137 = scmp.eq.s32.totalorder %s26, 1
      %p138 = scmp.ne.s32.totalorder %s133, %s135
      %p139 = scmp.eq.s32.totalorder %s26, 0
      %p140 = por %p138, %p139
      %p141 = scmp.ne.s32.totalorder %s133, %s135
      %p142 = scmp.eq.s32.totalorder %s31, 1
      %p143 = por %p141, %p142
      %p144 = scmp.ne.s32.totalorder %s135, %s136
      %p145 = scmp.eq.s32.totalorder %s31, 0
      %p146 = por %p144, %p145
      %p147 = scmp.ne.s32.totalorder %s135, %s136
      %p148 = scmp.eq.s32.totalorder %s32, 1
      %p149 = por %p147, %p148
      %p151 = scmp.ne.s32.totalorder %s136, %s150
      %p152 = scmp.eq.s32.totalorder %s32, 0
      %p153 = por %p151, %p152
      %s154 = ssub.s32 %s26, %s33
      %p155 = scmp.eq.s32.totalorder %s154, 0
      %s157 = sadd.s32 %s156, 1
      %s158 = scalar_select %p155, %s156, %s157
      %p161 = pneg %p155
      %p162 = scmp.eq.s32.totalorder %s26, 1
      %p163 = por %p161, %p162
      %p164 = scmp.ne.s32.totalorder %s156, %s159
      %p165 = scmp.eq.s32.totalorder %s26, 0
      %p166 = por %p164, %p165
      %p167 = scmp.ne.s32.totalorder %s156, %s159
      %p168 = scmp.eq.s32.totalorder %s31, 1
      %p169 = por %p167, %p168
      %p170 = scmp.ne.s32.totalorder %s159, %s160
      %p171 = scmp.eq.s32.totalorder %s31, 0
      %p172 = por %p170, %p171
      %p173 = scmp.ne.s32.totalorder %s159, %s160
      %p174 = scmp.eq.s32.totalorder %s32, 1
      %p175 = por %p173, %p174
      %p177 = scmp.ne.s32.totalorder %s160, %s176
      %p178 = scmp.eq.s32.totalorder %s32, 0
      %p179 = por %p177, %p178
      %s180 = ssub.s32 %s26, %s33
      %p181 = scmp.eq.s32.totalorder %s180, 0
      %s183 = sadd.s32 %s182, 1
      %s184 = scalar_select %p181, %s182, %s183
      %p187 = pneg %p181
      %p188 = scmp.eq.s32.totalorder %s26, 1
      %p189 = por %p187, %p188
      %p190 = scmp.ne.s32.totalorder %s182, %s185
      %p191 = scmp.eq.s32.totalorder %s26, 0
      %p192 = por %p190, %p191
      %p193 = scmp.ne.s32.totalorder %s182, %s185
      %p194 = scmp.eq.s32.totalorder %s31, 1
      %p195 = por %p193, %p194
      %p196 = scmp.ne.s32.totalorder %s185, %s186
      %p197 = scmp.eq.s32.totalorder %s31, 0
      %p198 = por %p196, %p197
      %p199 = scmp.ne.s32.totalorder %s185, %s186
      %p200 = scmp.eq.s32.totalorder %s32, 1
      %p201 = por %p199, %p200
      %p203 = scmp.ne.s32.totalorder %s186, %s202
      %p204 = scmp.eq.s32.totalorder %s32, 0
      %p205 = por %p203, %p204
      %p206 = scmp.le.s32.totalorder 1, %s26
      %p207 = scmp.lt.s32.totalorder %s26, 3
      %p208 = pnand %p206, %p207
      %p209 = pneg %p208
      // Predicated region
      $region9: #{tpu_custom_call.1} parent=5 // pred_check
        _
      $region10: #{tpu_custom_call.1} parent=5 // pred_check_branch
        %211 = sbr.rel (%p208) target = $region12
      $region11: #{tpu_custom_call.1} parent=5 // pred_region
        %s212 = ssub.s32 %s26, 1
        // Predicated region
        $region13: #{tpu_custom_call.1} parent=11 // pred_check
          %p213 = pneg %p125
        $region14: #{tpu_custom_call.1} parent=11 // pred_check_branch
          %215 = sbr.rel (%p213) target = $region16
        $region15: #{tpu_custom_call.1} parent=11 // pred_region
          %s217 = ssub.s32 12288, 12288
          %218 = vsyncadd [#allocation9], %s217
          %s219 = sshll.u32 [#allocation8], 4
          %s220 = int_to_ptr.vmem [resolvable:$true] %s219
          %225 = dma.hbm_to_vmem [thread:$0]  %s3, 12288, %s220, [#allocation9], 128, 128, 8
        $region16: #{tpu_custom_call.1} parent=11 // pred_fallthru
          _
        // Predicated region
        $region17: #{tpu_custom_call.1} parent=11 // pred_check
          %p226 = pneg %p146
        $region18: #{tpu_custom_call.1} parent=11 // pred_check_branch
          %228 = sbr.rel (%p226) target = $region20
        $region19: #{tpu_custom_call.1} parent=11 // pred_region
          %s230 = ssub.s32 512, 512
          %231 = vsyncadd [#allocation9], %s230
          %s232 = sshll.u32 [#allocation10], 4
          %s233 = int_to_ptr.vmem [resolvable:$true] %s232
          %238 = dma.hbm_to_vmem [thread:$0]  %s4, 512, %s233, [#allocation9], 256, 256, 16
        $region20: #{tpu_custom_call.1} parent=11 // pred_fallthru
          _
      $region12: #{tpu_custom_call.1} parent=5 // pred_fallthru
        _
      %p239 = scmp.lt.s32.totalorder %s26, 2
      // Predicated region
      $region21: #{tpu_custom_call.1} parent=5 // pred_check
        %p240 = pneg %p239
      $region22: #{tpu_custom_call.1} parent=5 // pred_check_branch
        %242 = sbr.rel (%p240) target = $region24
      $region23: #{tpu_custom_call.1} parent=5 // pred_region
        // Predicated region
        $region25: #{tpu_custom_call.1} parent=23 // pred_check
          %p243 = pneg %p46
        $region26: #{tpu_custom_call.1} parent=23 // pred_check_branch
          %245 = sbr.rel (%p243) target = $region28
        $region27: #{tpu_custom_call.1} parent=23 // pred_region
          %s246 = sand.u32 %s36, 1
          %s247 = scalar_lea.sflag [#allocation3], %s246
          %s248 = sand.u32 %s36, 1
          %s249 = smul.addr %s248, 208
          %s250 = scalar_lea.vmem [#allocation2], %s249
          %s251 = smul.u32 13, %s26
          %s253 = ssub.s32 3328, 3328
          %254 = vsyncadd %s247, %s253
          %s255 = smul.addr %s251, 2
          %s256 = smul.addr %s255, 128
          %s257 = scalar_lea.hbm %s0, %s256
          %s258 = sshll.u32 %s250, 4
          %s259 = int_to_ptr.vmem [resolvable:$true] %s258
          %264 = dma.hbm_to_vmem [thread:$0]  %s257, 3328, %s259, %s247, 256, 256, 16
        $region28: #{tpu_custom_call.1} parent=23 // pred_fallthru
          _
        // Predicated region
        $region29: #{tpu_custom_call.1} parent=23 // pred_check
          %p265 = pneg %p72
        $region30: #{tpu_custom_call.1} parent=23 // pred_check_branch
          %267 = sbr.rel (%p265) target = $region32
        $region31: #{tpu_custom_call.1} parent=23 // pred_region
          %s268 = sand.u32 %s26, 1
          %s269 = scalar_lea.sflag [#allocation6], %s268
          %s270 = sand.u32 %s62, 1
          %s271 = smul.addr %s270, 208
          %s272 = scalar_lea.vmem [#allocation5], %s271
          %s273 = smul.u32 13, %s26
          %s275 = ssub.s32 3328, 3328
          %276 = vsyncadd %s269, %s275
          %s277 = smul.addr %s273, 2
          %s278 = smul.addr %s277, 128
          %s279 = scalar_lea.hbm %s1, %s278
          %s280 = sshll.u32 %s272, 4
          %s281 = int_to_ptr.vmem [resolvable:$true] %s280
          %286 = dma.hbm_to_vmem [thread:$0]  %s279, 3328, %s281, %s269, 256, 256, 16
        $region32: #{tpu_custom_call.1} parent=23 // pred_fallthru
          _
        // Predicated region
        $region33: #{tpu_custom_call.1} parent=23 // pred_check
          %p287 = pneg %p98
        $region34: #{tpu_custom_call.1} parent=23 // pred_check_branch
          %289 = sbr.rel (%p287) target = $region36
        $region35: #{tpu_custom_call.1} parent=23 // pred_region
          %s290 = sand.u32 %s26, 1
          %s291 = scalar_lea.sflag [#allocation6], %s290
          %s292 = sand.u32 %s88, 1
          %s293 = smul.addr %s292, 208
          %s294 = scalar_lea.vmem [#allocation7], %s293
          %s295 = smul.u32 13, %s26
          %s297 = ssub.s32 3328, 3328
          %298 = vsyncadd %s291, %s297
          %s299 = smul.addr %s295, 2
          %s300 = smul.addr %s299, 128
          %s301 = scalar_lea.hbm %s2, %s300
          %s302 = sshll.u32 %s294, 4
          %s303 = int_to_ptr.vmem [resolvable:$true] %s302
          %308 = dma.hbm_to_vmem [thread:$0]  %s301, 3328, %s303, %s291, 256, 256, 16
        $region36: #{tpu_custom_call.1} parent=23 // pred_fallthru
          _
      $region24: #{tpu_custom_call.1} parent=5 // pred_fallthru
        _
      %p309 = scmp.le.s32.totalorder 1, %s26
      %p310 = scmp.lt.s32.totalorder %s26, 3
      %p311 = pnand %p309, %p310
      %p312 = pneg %p311
      // Predicated region
      $region37: #{tpu_custom_call.1} parent=5 // pred_check
        _
      $region38: #{tpu_custom_call.1} parent=5 // pred_check_branch
        %314 = sbr.rel (%p311) target = $region40
      $region39: #{tpu_custom_call.1} parent=5 // pred_region
        %s315 = ssub.s32 %s26, 1
        %s316 = sand.u32 %s39, 1
        %s317 = scalar_lea.sflag [#allocation3], %s316
        %s318 = sand.u32 %s39, 1
        %s319 = smul.addr %s318, 208
        %s320 = scalar_lea.vmem [#allocation2], %s319
        // Predicated region
        $region41: #{tpu_custom_call.1} parent=39 // pred_check
          %p321 = pneg %p52
        $region42: #{tpu_custom_call.1} parent=39 // pred_check_branch
          %323 = sbr.rel (%p321) target = $region44
        $region43: #{tpu_custom_call.1} parent=39 // pred_region
          %324 = dma.done %s317, 3328
        $region44: #{tpu_custom_call.1} parent=39 // pred_fallthru
          _
        %s325 = sand.u32 %s31, 1
        %s326 = scalar_lea.sflag [#allocation6], %s325
        %s327 = sand.u32 %s65, 1
        %s328 = smul.addr %s327, 208
        %s329 = scalar_lea.vmem [#allocation5], %s328
        // Predicated region
        $region45: #{tpu_custom_call.1} parent=39 // pred_check
          %p330 = pneg %p78
        $region46: #{tpu_custom_call.1} parent=39 // pred_check_branch
          %332 = sbr.rel (%p330) target = $region48
        $region47: #{tpu_custom_call.1} parent=39 // pred_region
          %333 = dma.done %s326, 3328
        $region48: #{tpu_custom_call.1} parent=39 // pred_fallthru
          _
        %s334 = sand.u32 %s31, 1
        %s335 = scalar_lea.sflag [#allocation6], %s334
        %s336 = sand.u32 %s91, 1
        %s337 = smul.addr %s336, 208
        %s338 = scalar_lea.vmem [#allocation7], %s337
        // Predicated region
        $region49: #{tpu_custom_call.1} parent=39 // pred_check
          %p339 = pneg %p104
        $region50: #{tpu_custom_call.1} parent=39 // pred_check_branch
          %341 = sbr.rel (%p339) target = $region52
        $region51: #{tpu_custom_call.1} parent=39 // pred_region
          %342 = dma.done %s335, 3328
        $region52: #{tpu_custom_call.1} parent=39 // pred_fallthru
          _
        // Predicated region
        $region53: #{tpu_custom_call.1} parent=39 // pred_check
          %p343 = pneg %p125
        $region54: #{tpu_custom_call.1} parent=39 // pred_check_branch
          %345 = sbr.rel (%p343) target = $region56
        $region55: #{tpu_custom_call.1} parent=39 // pred_region
          %346 = dma.done [#allocation9], 12288
        $region56: #{tpu_custom_call.1} parent=39 // pred_fallthru
          _
        // Predicated region
        $region57: #{tpu_custom_call.1} parent=39 // pred_check
          %p347 = pneg %p146
        $region58: #{tpu_custom_call.1} parent=39 // pred_check_branch
          %349 = sbr.rel (%p347) target = $region60
        $region59: #{tpu_custom_call.1} parent=39 // pred_region
          %350 = dma.done [#allocation9], 512
        $region60: #{tpu_custom_call.1} parent=39 // pred_fallthru
          _
        %s351 = sand.u32 %s39, 1
        %s352 = scalar_lea.sflag [#allocation3], %s351
        %s353 = sand.u32 %s39, 1
        %s354 = smul.addr %s353, 208
        %s355 = scalar_lea.vmem [#allocation2], %s354
        %p356 = pneg %p52
        %p357 = pneg %p49
        %s358 = sand.u32 %s31, 1
        %s359 = scalar_lea.sflag [#allocation6], %s358
        %s360 = sand.u32 %s65, 1
        %s361 = smul.addr %s360, 208
        %s362 = scalar_lea.vmem [#allocation5], %s361
        %p363 = pneg %p78
        %p364 = pneg %p75
        %s365 = sand.u32 %s31, 1
        %s366 = scalar_lea.sflag [#allocation6], %s365
        %s367 = sand.u32 %s91, 1
        %s368 = smul.addr %s367, 208
        %s369 = scalar_lea.vmem [#allocation7], %s368
        %p370 = pneg %p104
        %p371 = pneg %p101
        %p372 = pneg %p125
        %p373 = pneg %p122
        %p374 = pneg %p146
        %p375 = pneg %p143
        %p376 = pneg %p172
        %p377 = pneg %p169
        %s378 = sand.u32 %s159, 1
        %s379 = scalar_lea.sflag [#allocation4], %s378
        %s380 = sand.u32 %s159, 1
        %s381 = smul.addr %s380, 208
        %s382 = scalar_lea.vmem [#allocation11], %s381
        %p383 = pneg %p198
        %p384 = pneg %p195
        %s385 = sand.u32 %s185, 1
        %s386 = scalar_lea.sflag [#allocation13], %s385
        %s387 = sand.u32 %s185, 1
        %s388 = smul.addr %s387, 208
        %s389 = scalar_lea.vmem [#allocation12], %s388
        %s390 = smul.u32 13, %s31
        %s391 = smul.u32 13, %s31
        %s392 = smul.u32 13, %s31
        %s393 = smul.u32 13, %s31
        %s394 = smul.u32 13, %s31
        %v395 = vld [vmem:[%s320] sm:$0xff]
        %v396 = vld [vmem:[%s320 + $0x8] sm:$0xff]
        %v397 = vld [vmem:[%s320 + $0x10] sm:$0xff]
        %v398 = vld [vmem:[%s320 + $0x18] sm:$0xff]
        %v399 = vld [vmem:[%s320 + $0x20] sm:$0xff]
        %v400 = vld [vmem:[%s320 + $0x28] sm:$0xff]
        %v401 = vld [vmem:[%s320 + $0x30] sm:$0xff]
        %v402 = vld [vmem:[%s320 + $0x38] sm:$0xff]
        %v403 = vld [vmem:[%s320 + $0x40] sm:$0xff]
        %v404 = vld [vmem:[%s320 + $0x48] sm:$0xff]
        %v405 = vld [vmem:[%s320 + $0x50] sm:$0xff]
        %v406 = vld [vmem:[%s320 + $0x58] sm:$0xff]
        %v407 = vld [vmem:[%s320 + $0x60] sm:$0xff]
        %v408 = vld [vmem:[%s320 + $0x68] sm:$0xff]
        %v409 = vld [vmem:[%s320 + $0x70] sm:$0xff]
        %v410 = vld [vmem:[%s320 + $0x78] sm:$0xff]
        %v411 = vld [vmem:[%s320 + $0x80] sm:$0xff]
        %v412 = vld [vmem:[%s320 + $0x88] sm:$0xff]
        %v413 = vld [vmem:[%s320 + $0x90] sm:$0xff]
        %v414 = vld [vmem:[%s320 + $0x98] sm:$0xff]
        %v415 = vld [vmem:[%s320 + $0xa0] sm:$0xff]
        %v416 = vld [vmem:[%s320 + $0xa8] sm:$0xff]
        %v417 = vld [vmem:[%s320 + $0xb0] sm:$0xff]
        %v418 = vld [vmem:[%s320 + $0xb8] sm:$0xff]
        %v419 = vld [vmem:[%s320 + $0xc0] sm:$0xff]
        %v420 = vld [vmem:[%s320 + $0xc8] sm:$0xff]
        %v421 = vld [vmem:[%s329] sm:$0xff]
        %v422 = vld [vmem:[%s329 + $0x8] sm:$0xff]
        %v423 = vld [vmem:[%s329 + $0x10] sm:$0xff]
        %v424 = vld [vmem:[%s329 + $0x18] sm:$0xff]
        %v425 = vld [vmem:[%s329 + $0x20] sm:$0xff]
        %v426 = vld [vmem:[%s329 + $0x28] sm:$0xff]
        %v427 = vld [vmem:[%s329 + $0x30] sm:$0xff]
        %v428 = vld [vmem:[%s329 + $0x38] sm:$0xff]
        %v429 = vld [vmem:[%s329 + $0x40] sm:$0xff]
        %v430 = vld [vmem:[%s329 + $0x48] sm:$0xff]
        %v431 = vld [vmem:[%s329 + $0x50] sm:$0xff]
        %v432 = vld [vmem:[%s329 + $0x58] sm:$0xff]
        %v433 = vld [vmem:[%s329 + $0x60] sm:$0xff]
        %v434 = vld [vmem:[%s329 + $0x68] sm:$0xff]
        %v435 = vld [vmem:[%s329 + $0x70] sm:$0xff]
        %v436 = vld [vmem:[%s329 + $0x78] sm:$0xff]
        %v437 = vld [vmem:[%s329 + $0x80] sm:$0xff]
        %v438 = vld [vmem:[%s329 + $0x88] sm:$0xff]
        %v439 = vld [vmem:[%s329 + $0x90] sm:$0xff]
        %v440 = vld [vmem:[%s329 + $0x98] sm:$0xff]
        %v441 = vld [vmem:[%s329 + $0xa0] sm:$0xff]
        %v442 = vld [vmem:[%s329 + $0xa8] sm:$0xff]
        %v443 = vld [vmem:[%s329 + $0xb0] sm:$0xff]
        %v444 = vld [vmem:[%s329 + $0xb8] sm:$0xff]
        %v445 = vld [vmem:[%s329 + $0xc0] sm:$0xff]
        %v446 = vld [vmem:[%s329 + $0xc8] sm:$0xff]
        %v447 = vld [vmem:[%s338] sm:$0xff]
        %v448 = vld [vmem:[%s338 + $0x8] sm:$0xff]
        %v449 = vld [vmem:[%s338 + $0x10] sm:$0xff]
        %v450 = vld [vmem:[%s338 + $0x18] sm:$0xff]
        %v451 = vld [vmem:[%s338 + $0x20] sm:$0xff]
        %v452 = vld [vmem:[%s338 + $0x28] sm:$0xff]
        %v453 = vld [vmem:[%s338 + $0x30] sm:$0xff]
        %v454 = vld [vmem:[%s338 + $0x38] sm:$0xff]
        %v455 = vld [vmem:[%s338 + $0x40] sm:$0xff]
        %v456 = vld [vmem:[%s338 + $0x48] sm:$0xff]
        %v457 = vld [vmem:[%s338 + $0x50] sm:$0xff]
        %v458 = vld [vmem:[%s338 + $0x58] sm:$0xff]
        %v459 = vld [vmem:[%s338 + $0x60] sm:$0xff]
        %v460 = vld [vmem:[%s338 + $0x68] sm:$0xff]
        %v461 = vld [vmem:[%s338 + $0x70] sm:$0xff]
        %v462 = vld [vmem:[%s338 + $0x78] sm:$0xff]
        %v463 = vld [vmem:[%s338 + $0x80] sm:$0xff]
        %v464 = vld [vmem:[%s338 + $0x88] sm:$0xff]
        %v465 = vld [vmem:[%s338 + $0x90] sm:$0xff]
        %v466 = vld [vmem:[%s338 + $0x98] sm:$0xff]
        %v467 = vld [vmem:[%s338 + $0xa0] sm:$0xff]
        %v468 = vld [vmem:[%s338 + $0xa8] sm:$0xff]
        %v469 = vld [vmem:[%s338 + $0xb0] sm:$0xff]
        %v470 = vld [vmem:[%s338 + $0xb8] sm:$0xff]
        %v471 = vld [vmem:[%s338 + $0xc0] sm:$0xff]
        %v472 = vld [vmem:[%s338 + $0xc8] sm:$0xff]
        %v473 = vpack.c.bf16 %v397, %v395
        %v474 = vpack.c.bf16 %v398, %v396
        %v475 = vpack.c.bf16 %v401, %v399
        %v476 = vpack.c.bf16 %v402, %v400
        %v477 = vpack.c.bf16 %v405, %v403
        %v478 = vpack.c.bf16 %v406, %v404
        %v479 = vpack.c.bf16 %v409, %v407
        %v480 = vpack.c.bf16 %v410, %v408
        %v481 = vpack.c.bf16 %v413, %v411
        %v482 = vpack.c.bf16 %v414, %v412
        %v483 = vpack.c.bf16 %v417, %v415
        %v484 = vpack.c.bf16 %v418, %v416
        %v485 = vpack.c.bf16 %v419, %v419
        %v486 = vpack.c.bf16 %v420, %v420
        %v487 = vld [vmem:[#allocation8] sm:$0xff]
        %v488 = vld [vmem:[#allocation8 + $0x8] sm:$0xff]
        %v489 = vld [vmem:[#allocation8 + $0x10] sm:$0xff]
        %v490 = vld [vmem:[#allocation8 + $0x18] sm:$0xff]
        %v491 = vld [vmem:[#allocation8 + $0x20] sm:$0xff]
        %v492 = vld [vmem:[#allocation8 + $0x28] sm:$0xff]
        %v493 = vld [vmem:[#allocation8 + $0x30] sm:$0xff]
        %v494 = vld [vmem:[#allocation8 + $0x38] sm:$0xff]
        %v495 = vld [vmem:[#allocation8 + $0x40] sm:$0xff]
        %v496 = vld [vmem:[#allocation8 + $0x48] sm:$0xff]
        %v497 = vld [vmem:[#allocation8 + $0x50] sm:$0xff]
        %v498 = vld [vmem:[#allocation8 + $0x58] sm:$0xff]
        %v499 = vld [vmem:[#allocation8 + $0x60] sm:$0xff]
        %v500 = vld [vmem:[#allocation8 + $0x68] sm:$0xff]
        %v501 = vld [vmem:[#allocation8 + $0x70] sm:$0xff]
        %v502 = vld [vmem:[#allocation8 + $0x78] sm:$0xff]
        %v503 = vld [vmem:[#allocation8 + $0x80] sm:$0xff]
        %v504 = vld [vmem:[#allocation8 + $0x88] sm:$0xff]
        %v505 = vld [vmem:[#allocation8 + $0x90] sm:$0xff]
        %v506 = vld [vmem:[#allocation8 + $0x98] sm:$0xff]
        %v507 = vld [vmem:[#allocation8 + $0xa0] sm:$0xff]
        %v508 = vld [vmem:[#allocation8 + $0xa8] sm:$0xff]
        %v509 = vld [vmem:[#allocation8 + $0xb0] sm:$0xff]
        %v510 = vld [vmem:[#allocation8 + $0xb8] sm:$0xff]
        %v511 = vld [vmem:[#allocation8 + $0xc0] sm:$0xff]
        %v512 = vld [vmem:[#allocation8 + $0xc8] sm:$0xff]
        %v513 = vld [vmem:[#allocation8 + $0xd0] sm:$0xff]
        %v514 = vld [vmem:[#allocation8 + $0xd8] sm:$0xff]
        %v515 = vld [vmem:[#allocation8 + $0xe0] sm:$0xff]
        %v516 = vld [vmem:[#allocation8 + $0xe8] sm:$0xff]
        %v517 = vld [vmem:[#allocation8 + $0xf0] sm:$0xff]
        %v518 = vld [vmem:[#allocation8 + $0xf8] sm:$0xff]
        %v551 = vunpack.c.l.b16 %v487
        %v552 = vunpack.c.h.b16 %v487
        %v553 = vunpack.c.l.b16 %v488
        %v554 = vunpack.c.h.b16 %v488
        %v555 = vunpack.c.l.b16 %v489
        %v556 = vunpack.c.h.b16 %v489
        %v557 = vunpack.c.l.b16 %v490
        %v558 = vunpack.c.h.b16 %v490
        %v559 = vunpack.c.l.b16 %v491
        %v560 = vunpack.c.h.b16 %v491
        %v561 = vunpack.c.l.b16 %v492
        %v562 = vunpack.c.h.b16 %v492
        %v563 = vunpack.c.l.b16 %v493
        %v564 = vunpack.c.h.b16 %v493
        %v565 = vunpack.c.l.b16 %v494
        %v566 = vunpack.c.h.b16 %v494
        %v567 = vunpack.c.l.b16 %v495
        %v568 = vunpack.c.h.b16 %v495
        %v569 = vunpack.c.l.b16 %v496
        %v570 = vunpack.c.h.b16 %v496
        %v571 = vunpack.c.l.b16 %v497
        %v572 = vunpack.c.h.b16 %v497
        %v573 = vunpack.c.l.b16 %v498
        %v574 = vunpack.c.h.b16 %v498
        %v575 = vunpack.c.l.b16 %v499
        %v576 = vunpack.c.h.b16 %v499
        %v577 = vunpack.c.l.b16 %v500
        %v578 = vunpack.c.h.b16 %v500
        %v579 = vunpack.c.l.b16 %v501
        %v580 = vunpack.c.h.b16 %v501
        %v581 = vunpack.c.l.b16 %v502
        %v582 = vunpack.c.h.b16 %v502
        %v583 = vunpack.c.l.b16 %v503
        %v584 = vunpack.c.h.b16 %v503
        %v585 = vunpack.c.l.b16 %v504
        %v586 = vunpack.c.h.b16 %v504
        %v587 = vunpack.c.l.b16 %v505
        %v588 = vunpack.c.h.b16 %v505
        %v589 = vunpack.c.l.b16 %v506
        %v590 = vunpack.c.h.b16 %v506
        %v591 = vunpack.c.l.b16 %v507
        %v592 = vunpack.c.h.b16 %v507
        %v593 = vunpack.c.l.b16 %v508
        %v594 = vunpack.c.h.b16 %v508
        %v595 = vunpack.c.l.b16 %v509
        %v596 = vunpack.c.h.b16 %v509
        %v597 = vunpack.c.l.b16 %v510
        %v598 = vunpack.c.h.b16 %v510
        %v599 = vunpack.c.l.b16 %v511
        %v600 = vunpack.c.h.b16 %v511
        %v601 = vunpack.c.l.b16 %v512
        %v602 = vunpack.c.h.b16 %v512
        %v603 = vunpack.c.l.b16 %v513
        %v604 = vunpack.c.h.b16 %v513
        %v605 = vunpack.c.l.b16 %v514
        %v606 = vunpack.c.h.b16 %v514
        %v607 = vunpack.c.l.b16 %v515
        %v608 = vunpack.c.h.b16 %v515
        %v609 = vunpack.c.l.b16 %v516
        %v610 = vunpack.c.h.b16 %v516
        %v611 = vunpack.c.l.b16 %v517
        %v612 = vunpack.c.h.b16 %v517
        %v613 = vunpack.c.l.b16 %v518
        %v614 = vunpack.c.h.b16 %v518
        %v615 = vpack.c.b16 %v553, %v551
        %v616 = vpack.c.b16 %v554, %v552
        %v617 = vpack.c.b16 %v557, %v555
        %v618 = vpack.c.b16 %v558, %v556
        %v619 = vpack.c.b16 %v561, %v559
        %v620 = vpack.c.b16 %v562, %v560
        %v621 = vpack.c.b16 %v565, %v563
        %v622 = vpack.c.b16 %v566, %v564
        %v623 = vpack.c.b16 %v569, %v567
        %v624 = vpack.c.b16 %v570, %v568
        %v625 = vpack.c.b16 %v573, %v571
        %v626 = vpack.c.b16 %v574, %v572
        %v627 = vpack.c.b16 %v577, %v575
        %v628 = vpack.c.b16 %v578, %v576
        %v629 = vpack.c.b16 %v581, %v579
        %v630 = vpack.c.b16 %v582, %v580
        %v631 = vpack.c.b16 %v585, %v583
        %v632 = vpack.c.b16 %v586, %v584
        %v633 = vpack.c.b16 %v589, %v587
        %v634 = vpack.c.b16 %v590, %v588
        %v635 = vpack.c.b16 %v593, %v591
        %v636 = vpack.c.b16 %v594, %v592
        %v637 = vpack.c.b16 %v597, %v595
        %v638 = vpack.c.b16 %v598, %v596
        %v639 = vpack.c.b16 %v601, %v599
        %v640 = vpack.c.b16 %v602, %v600
        %v641 = vpack.c.b16 %v605, %v603
        %v642 = vpack.c.b16 %v606, %v604
        %v643 = vpack.c.b16 %v609, %v607
        %v644 = vpack.c.b16 %v610, %v608
        %v645 = vpack.c.b16 %v613, %v611
        %v646 = vpack.c.b16 %v614, %v612
        %679 = vmatprep.subr.bf16.mxu0 %v630
        %680 = vmatpush1.bf16.msra.mxu0 %v629
        %681 = vmatprep.subr.bf16.mxu0 %v628
        %682 = vmatpush1.bf16.msra.mxu0 %v627
        %683 = vmatprep.subr.bf16.mxu0 %v626
        %684 = vmatpush1.bf16.msra.mxu0 %v625
        %685 = vmatprep.subr.bf16.mxu0 %v624
        %686 = vmatpush1.bf16.msra.mxu0 %v623
        %687 = vmatprep.subr.bf16.mxu0 %v622
        %688 = vmatpush1.bf16.msra.mxu0 %v621
        %689 = vmatprep.subr.bf16.mxu0 %v620
        %690 = vmatpush1.bf16.msra.mxu0 %v619
        %691 = vmatprep.subr.bf16.mxu0 %v618
        %692 = vmatpush1.bf16.msra.mxu0 %v617
        %693 = vmatprep.subr.bf16.mxu0 %v616
        %694 = vmatpush1.bf16.msra.mxu0 %v615
        %695 = vmatprep.subr.bf16.mxu0 %v646
        %696 = vmatpush2.bf16.msra.mxu0 %v645
        %697 = vmatprep.subr.bf16.mxu0 %v644
        %698 = vmatpush2.bf16.msra.mxu0 %v643
        %699 = vmatprep.subr.bf16.mxu0 %v642
        %700 = vmatpush2.bf16.msra.mxu0 %v641
        %701 = vmatprep.subr.bf16.mxu0 %v640
        %702 = vmatpush2.bf16.msra.mxu0 %v639
        %703 = vmatprep.subr.bf16.mxu0 %v638
        %704 = vmatpush2.bf16.msra.mxu0 %v637
        %705 = vmatprep.subr.bf16.mxu0 %v636
        %706 = vmatpush2.bf16.msra.mxu0 %v635
        %707 = vmatprep.subr.bf16.mxu0 %v634
        %708 = vmatpush2.bf16.msra.mxu0 %v633
        %709 = vmatprep.subr.bf16.mxu0 %v632
        %710 = vmatpush2.bf16.msra.mxu0 %v631
        %711 = vmatprep.mubr.bf16.mxu0 %v474
        %712 = vmatmul.mubr.bf16.gmra.mxu0 %v473
        %v713 = vpop.f32.mrf.mxu0
        %v714 = vadd.f32 0.0, %v713
        %v715 = vpop.f32.mrf.mxu0
        %v716 = vadd.f32 0.0, %v715
        %v717 = vpop.f32.mrf.mxu0
        %v718 = vadd.f32 0.0, %v717
        %v719 = vpop.f32.mrf.mxu0
        %v720 = vadd.f32 0.0, %v719
        %721 = vmatprep.mubr.bf16.mxu0 %v476
        %722 = vmatmul.mubr.bf16.gmra.mxu0 %v475
        %v723 = vpop.f32.mrf.mxu0
        %v724 = vadd.f32 0.0, %v723
        %v725 = vpop.f32.mrf.mxu0
        %v726 = vadd.f32 0.0, %v725
        %v727 = vpop.f32.mrf.mxu0
        %v728 = vadd.f32 0.0, %v727
        %v729 = vpop.f32.mrf.mxu0
        %v730 = vadd.f32 0.0, %v729
        %731 = vmatprep.mubr.bf16.mxu0 %v478
        %732 = vmatmul.mubr.bf16.gmra.mxu0 %v477
        %v733 = vpop.f32.mrf.mxu0
        %v734 = vadd.f32 0.0, %v733
        %v735 = vpop.f32.mrf.mxu0
        %v736 = vadd.f32 0.0, %v735
        %v737 = vpop.f32.mrf.mxu0
        %v738 = vadd.f32 0.0, %v737
        %v739 = vpop.f32.mrf.mxu0
        %v740 = vadd.f32 0.0, %v739
        %741 = vmatprep.mubr.bf16.mxu0 %v480
        %742 = vmatmul.mubr.bf16.gmra.mxu0 %v479
        %v743 = vpop.f32.mrf.mxu0
        %v744 = vadd.f32 0.0, %v743
        %v745 = vpop.f32.mrf.mxu0
        %v746 = vadd.f32 0.0, %v745
        %v747 = vpop.f32.mrf.mxu0
        %v748 = vadd.f32 0.0, %v747
        %v749 = vpop.f32.mrf.mxu0
        %v750 = vadd.f32 0.0, %v749
        %751 = vmatprep.mubr.bf16.mxu0 %v482
        %752 = vmatmul.mubr.bf16.gmra.mxu0 %v481
        %v753 = vpop.f32.mrf.mxu0
        %v754 = vadd.f32 0.0, %v753
        %v755 = vpop.f32.mrf.mxu0
        %v756 = vadd.f32 0.0, %v755
        %v757 = vpop.f32.mrf.mxu0
        %v758 = vadd.f32 0.0, %v757
        %v759 = vpop.f32.mrf.mxu0
        %v760 = vadd.f32 0.0, %v759
        %761 = vmatprep.mubr.bf16.mxu0 %v484
        %762 = vmatmul.mubr.bf16.gmra.mxu0 %v483
        %v763 = vpop.f32.mrf.mxu0
        %v764 = vadd.f32 0.0, %v763
        %v765 = vpop.f32.mrf.mxu0
        %v766 = vadd.f32 0.0, %v765
        %v767 = vpop.f32.mrf.mxu0
        %v768 = vadd.f32 0.0, %v767
        %v769 = vpop.f32.mrf.mxu0
        %v770 = vadd.f32 0.0, %v769
        %771 = vmatprep.mubr.bf16.mxu0 %v486
        %772 = vmatmul.mubr.bf16.gmra.mxu0 %v485
        %v773 = vpop.f32.mrf.mxu0
        %v774 = vadd.f32 0.0, %v773
        %v775 = vpop.f32.mrf.mxu0
        %v776 = vadd.f32 0.0, %v775
        %v777 = vpop.f32.mrf.mxu0
        %v778 = vpop.f32.mrf.mxu0
        %779 = vdwg.mxu0
        %v780 = vld [vmem:[#allocation10] ss:$8 sm:$0x3]
        %v782 = vlaneseq
        %v783 = vshrl.u32 %v782, 7
        %v784 = vsub.s32 0, %v783
        %v785 = vrot.slane %v780, %v784
        %v786 = vlaneseq
        %v787 = vshrl.u32 %v786, 7
        %v788 = vsub.s32 1, %v787
        %v789 = vrot.slane %v780, %v788
        %v792 = vmul.f32 %v714, %v785
        %v793 = vmul.f32 %v716, %v789
        %v794 = vmul.f32 %v718, %v785
        %v795 = vmul.f32 %v720, %v789
        %v796 = vmul.f32 %v724, %v785
        %v797 = vmul.f32 %v726, %v789
        %v798 = vmul.f32 %v728, %v785
        %v799 = vmul.f32 %v730, %v789
        %v800 = vmul.f32 %v734, %v785
        %v801 = vmul.f32 %v736, %v789
        %v802 = vmul.f32 %v738, %v785
        %v803 = vmul.f32 %v740, %v789
        %v804 = vmul.f32 %v744, %v785
        %v805 = vmul.f32 %v746, %v789
        %v806 = vmul.f32 %v748, %v785
        %v807 = vmul.f32 %v750, %v789
        %v808 = vmul.f32 %v754, %v785
        %v809 = vmul.f32 %v756, %v789
        %v810 = vmul.f32 %v758, %v785
        %v811 = vmul.f32 %v760, %v789
        %v812 = vmul.f32 %v764, %v785
        %v813 = vmul.f32 %v766, %v789
        %v814 = vmul.f32 %v768, %v785
        %v815 = vmul.f32 %v770, %v789
        %v816 = vmul.f32 %v774, %v785
        %v817 = vmul.f32 %v776, %v789
        %s818 = scalar_lea.vmem [#allocation10], 1
        %v819 = vld [vmem:[%s818] ss:$8 sm:$0x3]
        %v821 = vlaneseq
        %v822 = vshrl.u32 %v821, 7
        %v823 = vsub.s32 0, %v822
        %v824 = vrot.slane %v819, %v823
        %v825 = vlaneseq
        %v826 = vshrl.u32 %v825, 7
        %v827 = vsub.s32 1, %v826
        %v828 = vrot.slane %v819, %v827
        %v831 = vadd.f32 %v792, %v824
        %v832 = vadd.f32 %v793, %v828
        %v833 = vadd.f32 %v794, %v824
        %v834 = vadd.f32 %v795, %v828
        %v835 = vadd.f32 %v796, %v824
        %v836 = vadd.f32 %v797, %v828
        %v837 = vadd.f32 %v798, %v824
        %v838 = vadd.f32 %v799, %v828
        %v839 = vadd.f32 %v800, %v824
        %v840 = vadd.f32 %v801, %v828
        %v841 = vadd.f32 %v802, %v824
        %v842 = vadd.f32 %v803, %v828
        %v843 = vadd.f32 %v804, %v824
        %v844 = vadd.f32 %v805, %v828
        %v845 = vadd.f32 %v806, %v824
        %v846 = vadd.f32 %v807, %v828
        %v847 = vadd.f32 %v808, %v824
        %v848 = vadd.f32 %v809, %v828
        %v849 = vadd.f32 %v810, %v824
        %v850 = vadd.f32 %v811, %v828
        %v851 = vadd.f32 %v812, %v824
        %v852 = vadd.f32 %v813, %v828
        %v853 = vadd.f32 %v814, %v824
        %v854 = vadd.f32 %v815, %v828
        %v855 = vadd.f32 %v816, %v824
        %v856 = vadd.f32 %v817, %v828
        %v857 = vmax.f32 %v831, 0.0
        %v858 = vmax.f32 %v832, 0.0
        %v859 = vmax.f32 %v833, 0.0
        %v860 = vmax.f32 %v834, 0.0
        %v861 = vmax.f32 %v835, 0.0
        %v862 = vmax.f32 %v836, 0.0
        %v863 = vmax.f32 %v837, 0.0
        %v864 = vmax.f32 %v838, 0.0
        %v865 = vmax.f32 %v839, 0.0
        %v866 = vmax.f32 %v840, 0.0
        %v867 = vmax.f32 %v841, 0.0
        %v868 = vmax.f32 %v842, 0.0
        %v869 = vmax.f32 %v843, 0.0
        %v870 = vmax.f32 %v844, 0.0
        %v871 = vmax.f32 %v845, 0.0
        %v872 = vmax.f32 %v846, 0.0
        %v873 = vmax.f32 %v847, 0.0
        %v874 = vmax.f32 %v848, 0.0
        %v875 = vmax.f32 %v849, 0.0
        %v876 = vmax.f32 %v850, 0.0
        %v877 = vmax.f32 %v851, 0.0
        %v878 = vmax.f32 %v852, 0.0
        %v879 = vmax.f32 %v853, 0.0
        %v880 = vmax.f32 %v854, 0.0
        %v881 = vmax.f32 %v855, 0.0
        %v882 = vmax.f32 %v856, 0.0
        %v883 = vpack.c.bf16 %v423, %v421
        %v884 = vpack.c.bf16 %v424, %v422
        %v885 = vpack.c.bf16 %v427, %v425
        %v886 = vpack.c.bf16 %v428, %v426
        %v887 = vpack.c.bf16 %v431, %v429
        %v888 = vpack.c.bf16 %v432, %v430
        %v889 = vpack.c.bf16 %v435, %v433
        %v890 = vpack.c.bf16 %v436, %v434
        %v891 = vpack.c.bf16 %v439, %v437
        %v892 = vpack.c.bf16 %v440, %v438
        %v893 = vpack.c.bf16 %v443, %v441
        %v894 = vpack.c.bf16 %v444, %v442
        %v895 = vpack.c.bf16 %v445, %v445
        %v896 = vpack.c.bf16 %v446, %v446
        %s897 = scalar_lea.vmem [#allocation8], 256
        %v898 = vld [vmem:[%s897] sm:$0xff]
        %v899 = vld [vmem:[%s897 + $0x8] sm:$0xff]
        %v900 = vld [vmem:[%s897 + $0x10] sm:$0xff]
        %v901 = vld [vmem:[%s897 + $0x18] sm:$0xff]
        %v902 = vld [vmem:[%s897 + $0x20] sm:$0xff]
        %v903 = vld [vmem:[%s897 + $0x28] sm:$0xff]
        %v904 = vld [vmem:[%s897 + $0x30] sm:$0xff]
        %v905 = vld [vmem:[%s897 + $0x38] sm:$0xff]
        %v906 = vld [vmem:[%s897 + $0x40] sm:$0xff]
        %v907 = vld [vmem:[%s897 + $0x48] sm:$0xff]
        %v908 = vld [vmem:[%s897 + $0x50] sm:$0xff]
        %v909 = vld [vmem:[%s897 + $0x58] sm:$0xff]
        %v910 = vld [vmem:[%s897 + $0x60] sm:$0xff]
        %v911 = vld [vmem:[%s897 + $0x68] sm:$0xff]
        %v912 = vld [vmem:[%s897 + $0x70] sm:$0xff]
        %v913 = vld [vmem:[%s897 + $0x78] sm:$0xff]
        %v914 = vld [vmem:[%s897 + $0x80] sm:$0xff]
        %v915 = vld [vmem:[%s897 + $0x88] sm:$0xff]
        %v916 = vld [vmem:[%s897 + $0x90] sm:$0xff]
        %v917 = vld [vmem:[%s897 + $0x98] sm:$0xff]
        %v918 = vld [vmem:[%s897 + $0xa0] sm:$0xff]
        %v919 = vld [vmem:[%s897 + $0xa8] sm:$0xff]
        %v920 = vld [vmem:[%s897 + $0xb0] sm:$0xff]
        %v921 = vld [vmem:[%s897 + $0xb8] sm:$0xff]
        %v922 = vld [vmem:[%s897 + $0xc0] sm:$0xff]
        %v923 = vld [vmem:[%s897 + $0xc8] sm:$0xff]
        %v924 = vld [vmem:[%s897 + $0xd0] sm:$0xff]
        %v925 = vld [vmem:[%s897 + $0xd8] sm:$0xff]
        %v926 = vld [vmem:[%s897 + $0xe0] sm:$0xff]
        %v927 = vld [vmem:[%s897 + $0xe8] sm:$0xff]
        %v928 = vld [vmem:[%s897 + $0xf0] sm:$0xff]
        %v929 = vld [vmem:[%s897 + $0xf8] sm:$0xff]
        %v962 = vunpack.c.l.b16 %v898
        %v963 = vunpack.c.h.b16 %v898
        %v964 = vunpack.c.l.b16 %v899
        %v965 = vunpack.c.h.b16 %v899
        %v966 = vunpack.c.l.b16 %v900
        %v967 = vunpack.c.h.b16 %v900
        %v968 = vunpack.c.l.b16 %v901
        %v969 = vunpack.c.h.b16 %v901
        %v970 = vunpack.c.l.b16 %v902
        %v971 = vunpack.c.h.b16 %v902
        %v972 = vunpack.c.l.b16 %v903
        %v973 = vunpack.c.h.b16 %v903
        %v974 = vunpack.c.l.b16 %v904
        %v975 = vunpack.c.h.b16 %v904
        %v976 = vunpack.c.l.b16 %v905
        %v977 = vunpack.c.h.b16 %v905
        %v978 = vunpack.c.l.b16 %v906
        %v979 = vunpack.c.h.b16 %v906
        %v980 = vunpack.c.l.b16 %v907
        %v981 = vunpack.c.h.b16 %v907
        %v982 = vunpack.c.l.b16 %v908
        %v983 = vunpack.c.h.b16 %v908
        %v984 = vunpack.c.l.b16 %v909
        %v985 = vunpack.c.h.b16 %v909
        %v986 = vunpack.c.l.b16 %v910
        %v987 = vunpack.c.h.b16 %v910
        %v988 = vunpack.c.l.b16 %v911
        %v989 = vunpack.c.h.b16 %v911
        %v990 = vunpack.c.l.b16 %v912
        %v991 = vunpack.c.h.b16 %v912
        %v992 = vunpack.c.l.b16 %v913
        %v993 = vunpack.c.h.b16 %v913
        %v994 = vunpack.c.l.b16 %v914
        %v995 = vunpack.c.h.b16 %v914
        %v996 = vunpack.c.l.b16 %v915
        %v997 = vunpack.c.h.b16 %v915
        %v998 = vunpack.c.l.b16 %v916
        %v999 = vunpack.c.h.b16 %v916
        %v1000 = vunpack.c.l.b16 %v917
        %v1001 = vunpack.c.h.b16 %v917
        %v1002 = vunpack.c.l.b16 %v918
        %v1003 = vunpack.c.h.b16 %v918
        %v1004 = vunpack.c.l.b16 %v919
        %v1005 = vunpack.c.h.b16 %v919
        %v1006 = vunpack.c.l.b16 %v920
        %v1007 = vunpack.c.h.b16 %v920
        %v1008 = vunpack.c.l.b16 %v921
        %v1009 = vunpack.c.h.b16 %v921
        %v1010 = vunpack.c.l.b16 %v922
        %v1011 = vunpack.c.h.b16 %v922
        %v1012 = vunpack.c.l.b16 %v923
        %v1013 = vunpack.c.h.b16 %v923
        %v1014 = vunpack.c.l.b16 %v924
        %v1015 = vunpack.c.h.b16 %v924
        %v1016 = vunpack.c.l.b16 %v925
        %v1017 = vunpack.c.h.b16 %v925
        %v1018 = vunpack.c.l.b16 %v926
        %v1019 = vunpack.c.h.b16 %v926
        %v1020 = vunpack.c.l.b16 %v927
        %v1021 = vunpack.c.h.b16 %v927
        %v1022 = vunpack.c.l.b16 %v928
        %v1023 = vunpack.c.h.b16 %v928
        %v1024 = vunpack.c.l.b16 %v929
        %v1025 = vunpack.c.h.b16 %v929
        %v1026 = vpack.c.b16 %v964, %v962
        %v1027 = vpack.c.b16 %v965, %v963
        %v1028 = vpack.c.b16 %v968, %v966
        %v1029 = vpack.c.b16 %v969, %v967
        %v1030 = vpack.c.b16 %v972, %v970
        %v1031 = vpack.c.b16 %v973, %v971
        %v1032 = vpack.c.b16 %v976, %v974
        %v1033 = vpack.c.b16 %v977, %v975
        %v1034 = vpack.c.b16 %v980, %v978
        %v1035 = vpack.c.b16 %v981, %v979
        %v1036 = vpack.c.b16 %v984, %v982
        %v1037 = vpack.c.b16 %v985, %v983
        %v1038 = vpack.c.b16 %v988, %v986
        %v1039 = vpack.c.b16 %v989, %v987
        %v1040 = vpack.c.b16 %v992, %v990
        %v1041 = vpack.c.b16 %v993, %v991
        %v1042 = vpack.c.b16 %v996, %v994
        %v1043 = vpack.c.b16 %v997, %v995
        %v1044 = vpack.c.b16 %v1000, %v998
        %v1045 = vpack.c.b16 %v1001, %v999
        %v1046 = vpack.c.b16 %v1004, %v1002
        %v1047 = vpack.c.b16 %v1005, %v1003
        %v1048 = vpack.c.b16 %v1008, %v1006
        %v1049 = vpack.c.b16 %v1009, %v1007
        %v1050 = vpack.c.b16 %v1012, %v1010
        %v1051 = vpack.c.b16 %v1013, %v1011
        %v1052 = vpack.c.b16 %v1016, %v1014
        %v1053 = vpack.c.b16 %v1017, %v1015
        %v1054 = vpack.c.b16 %v1020, %v1018
        %v1055 = vpack.c.b16 %v1021, %v1019
        %v1056 = vpack.c.b16 %v1024, %v1022
        %v1057 = vpack.c.b16 %v1025, %v1023
        %1090 = vmatprep.subr.bf16.mxu0 %v1041
        %1091 = vmatpush1.bf16.msra.mxu0 %v1040
        %1092 = vmatprep.subr.bf16.mxu0 %v1039
        %1093 = vmatpush1.bf16.msra.mxu0 %v1038
        %1094 = vmatprep.subr.bf16.mxu0 %v1037
        %1095 = vmatpush1.bf16.msra.mxu0 %v1036
        %1096 = vmatprep.subr.bf16.mxu0 %v1035
        %1097 = vmatpush1.bf16.msra.mxu0 %v1034
        %1098 = vmatprep.subr.bf16.mxu0 %v1033
        %1099 = vmatpush1.bf16.msra.mxu0 %v1032
        %1100 = vmatprep.subr.bf16.mxu0 %v1031
        %1101 = vmatpush1.bf16.msra.mxu0 %v1030
        %1102 = vmatprep.subr.bf16.mxu0 %v1029
        %1103 = vmatpush1.bf16.msra.mxu0 %v1028
        %1104 = vmatprep.subr.bf16.mxu0 %v1027
        %1105 = vmatpush1.bf16.msra.mxu0 %v1026
        %1106 = vmatprep.subr.bf16.mxu0 %v1057
        %1107 = vmatpush2.bf16.msra.mxu0 %v1056
        %1108 = vmatprep.subr.bf16.mxu0 %v1055
        %1109 = vmatpush2.bf16.msra.mxu0 %v1054
        %1110 = vmatprep.subr.bf16.mxu0 %v1053
        %1111 = vmatpush2.bf16.msra.mxu0 %v1052
        %1112 = vmatprep.subr.bf16.mxu0 %v1051
        %1113 = vmatpush2.bf16.msra.mxu0 %v1050
        %1114 = vmatprep.subr.bf16.mxu0 %v1049
        %1115 = vmatpush2.bf16.msra.mxu0 %v1048
        %1116 = vmatprep.subr.bf16.mxu0 %v1047
        %1117 = vmatpush2.bf16.msra.mxu0 %v1046
        %1118 = vmatprep.subr.bf16.mxu0 %v1045
        %1119 = vmatpush2.bf16.msra.mxu0 %v1044
        %1120 = vmatprep.subr.bf16.mxu0 %v1043
        %1121 = vmatpush2.bf16.msra.mxu0 %v1042
        %1122 = vmatprep.mubr.bf16.mxu0 %v884
        %1123 = vmatmul.mubr.bf16.gmra.mxu0 %v883
        %v1124 = vpop.f32.mrf.mxu0
        %v1125 = vadd.f32 0.0, %v1124
        %v1126 = vpop.f32.mrf.mxu0
        %v1127 = vadd.f32 0.0, %v1126
        %v1128 = vpop.f32.mrf.mxu0
        %v1129 = vadd.f32 0.0, %v1128
        %v1130 = vpop.f32.mrf.mxu0
        %v1131 = vadd.f32 0.0, %v1130
        %1132 = vmatprep.mubr.bf16.mxu0 %v886
        %1133 = vmatmul.mubr.bf16.gmra.mxu0 %v885
        %v1134 = vpop.f32.mrf.mxu0
        %v1135 = vadd.f32 0.0, %v1134
        %v1136 = vpop.f32.mrf.mxu0
        %v1137 = vadd.f32 0.0, %v1136
        %v1138 = vpop.f32.mrf.mxu0
        %v1139 = vadd.f32 0.0, %v1138
        %v1140 = vpop.f32.mrf.mxu0
        %v1141 = vadd.f32 0.0, %v1140
        %1142 = vmatprep.mubr.bf16.mxu0 %v888
        %1143 = vmatmul.mubr.bf16.gmra.mxu0 %v887
        %v1144 = vpop.f32.mrf.mxu0
        %v1145 = vadd.f32 0.0, %v1144
        %v1146 = vpop.f32.mrf.mxu0
        %v1147 = vadd.f32 0.0, %v1146
        %v1148 = vpop.f32.mrf.mxu0
        %v1149 = vadd.f32 0.0, %v1148
        %v1150 = vpop.f32.mrf.mxu0
        %v1151 = vadd.f32 0.0, %v1150
        %1152 = vmatprep.mubr.bf16.mxu0 %v890
        %1153 = vmatmul.mubr.bf16.gmra.mxu0 %v889
        %v1154 = vpop.f32.mrf.mxu0
        %v1155 = vadd.f32 0.0, %v1154
        %v1156 = vpop.f32.mrf.mxu0
        %v1157 = vadd.f32 0.0, %v1156
        %v1158 = vpop.f32.mrf.mxu0
        %v1159 = vadd.f32 0.0, %v1158
        %v1160 = vpop.f32.mrf.mxu0
        %v1161 = vadd.f32 0.0, %v1160
        %1162 = vmatprep.mubr.bf16.mxu0 %v892
        %1163 = vmatmul.mubr.bf16.gmra.mxu0 %v891
        %v1164 = vpop.f32.mrf.mxu0
        %v1165 = vadd.f32 0.0, %v1164
        %v1166 = vpop.f32.mrf.mxu0
        %v1167 = vadd.f32 0.0, %v1166
        %v1168 = vpop.f32.mrf.mxu0
        %v1169 = vadd.f32 0.0, %v1168
        %v1170 = vpop.f32.mrf.mxu0
        %v1171 = vadd.f32 0.0, %v1170
        %1172 = vmatprep.mubr.bf16.mxu0 %v894
        %1173 = vmatmul.mubr.bf16.gmra.mxu0 %v893
        %v1174 = vpop.f32.mrf.mxu0
        %v1175 = vadd.f32 0.0, %v1174
        %v1176 = vpop.f32.mrf.mxu0
        %v1177 = vadd.f32 0.0, %v1176
        %v1178 = vpop.f32.mrf.mxu0
        %v1179 = vadd.f32 0.0, %v1178
        %v1180 = vpop.f32.mrf.mxu0
        %v1181 = vadd.f32 0.0, %v1180
        %1182 = vmatprep.mubr.bf16.mxu0 %v896
        %1183 = vmatmul.mubr.bf16.gmra.mxu0 %v895
        %v1184 = vpop.f32.mrf.mxu0
        %v1185 = vadd.f32 0.0, %v1184
        %v1186 = vpop.f32.mrf.mxu0
        %v1187 = vadd.f32 0.0, %v1186
        %v1188 = vpop.f32.mrf.mxu0
        %v1189 = vpop.f32.mrf.mxu0
        %1190 = vdwg.mxu0
        %s1191 = scalar_lea.vmem [#allocation10], 2
        %v1192 = vld [vmem:[%s1191] ss:$8 sm:$0x3]
        %v1194 = vlaneseq
        %v1195 = vshrl.u32 %v1194, 7
        %v1196 = vsub.s32 0, %v1195
        %v1197 = vrot.slane %v1192, %v1196
        %v1198 = vlaneseq
        %v1199 = vshrl.u32 %v1198, 7
        %v1200 = vsub.s32 1, %v1199
        %v1201 = vrot.slane %v1192, %v1200
        %v1204 = vmul.f32 %v1125, %v1197
        %v1205 = vmul.f32 %v1127, %v1201
        %v1206 = vmul.f32 %v1129, %v1197
        %v1207 = vmul.f32 %v1131, %v1201
        %v1208 = vmul.f32 %v1135, %v1197
        %v1209 = vmul.f32 %v1137, %v1201
        %v1210 = vmul.f32 %v1139, %v1197
        %v1211 = vmul.f32 %v1141, %v1201
        %v1212 = vmul.f32 %v1145, %v1197
        %v1213 = vmul.f32 %v1147, %v1201
        %v1214 = vmul.f32 %v1149, %v1197
        %v1215 = vmul.f32 %v1151, %v1201
        %v1216 = vmul.f32 %v1155, %v1197
        %v1217 = vmul.f32 %v1157, %v1201
        %v1218 = vmul.f32 %v1159, %v1197
        %v1219 = vmul.f32 %v1161, %v1201
        %v1220 = vmul.f32 %v1165, %v1197
        %v1221 = vmul.f32 %v1167, %v1201
        %v1222 = vmul.f32 %v1169, %v1197
        %v1223 = vmul.f32 %v1171, %v1201
        %v1224 = vmul.f32 %v1175, %v1197
        %v1225 = vmul.f32 %v1177, %v1201
        %v1226 = vmul.f32 %v1179, %v1197
        %v1227 = vmul.f32 %v1181, %v1201
        %v1228 = vmul.f32 %v1185, %v1197
        %v1229 = vmul.f32 %v1187, %v1201
        %s1230 = scalar_lea.vmem [#allocation10], 3
        %v1231 = vld [vmem:[%s1230] ss:$8 sm:$0x3]
        %v1233 = vlaneseq
        %v1234 = vshrl.u32 %v1233, 7
        %v1235 = vsub.s32 0, %v1234
        %v1236 = vrot.slane %v1231, %v1235
        %v1237 = vlaneseq
        %v1238 = vshrl.u32 %v1237, 7
        %v1239 = vsub.s32 1, %v1238
        %v1240 = vrot.slane %v1231, %v1239
        %v1243 = vadd.f32 %v1204, %v1236
        %v1244 = vadd.f32 %v1205, %v1240
        %v1245 = vadd.f32 %v1206, %v1236
        %v1246 = vadd.f32 %v1207, %v1240
        %v1247 = vadd.f32 %v1208, %v1236
        %v1248 = vadd.f32 %v1209, %v1240
        %v1249 = vadd.f32 %v1210, %v1236
        %v1250 = vadd.f32 %v1211, %v1240
        %v1251 = vadd.f32 %v1212, %v1236
        %v1252 = vadd.f32 %v1213, %v1240
        %v1253 = vadd.f32 %v1214, %v1236
        %v1254 = vadd.f32 %v1215, %v1240
        %v1255 = vadd.f32 %v1216, %v1236
        %v1256 = vadd.f32 %v1217, %v1240
        %v1257 = vadd.f32 %v1218, %v1236
        %v1258 = vadd.f32 %v1219, %v1240
        %v1259 = vadd.f32 %v1220, %v1236
        %v1260 = vadd.f32 %v1221, %v1240
        %v1261 = vadd.f32 %v1222, %v1236
        %v1262 = vadd.f32 %v1223, %v1240
        %v1263 = vadd.f32 %v1224, %v1236
        %v1264 = vadd.f32 %v1225, %v1240
        %v1265 = vadd.f32 %v1226, %v1236
        %v1266 = vadd.f32 %v1227, %v1240
        %v1267 = vadd.f32 %v1228, %v1236
        %v1268 = vadd.f32 %v1229, %v1240
        %v1269 = vmax.f32 %v1243, 0.0
        %v1270 = vmax.f32 %v1244, 0.0
        %v1271 = vmax.f32 %v1245, 0.0
        %v1272 = vmax.f32 %v1246, 0.0
        %v1273 = vmax.f32 %v1247, 0.0
        %v1274 = vmax.f32 %v1248, 0.0
        %v1275 = vmax.f32 %v1249, 0.0
        %v1276 = vmax.f32 %v1250, 0.0
        %v1277 = vmax.f32 %v1251, 0.0
        %v1278 = vmax.f32 %v1252, 0.0
        %v1279 = vmax.f32 %v1253, 0.0
        %v1280 = vmax.f32 %v1254, 0.0
        %v1281 = vmax.f32 %v1255, 0.0
        %v1282 = vmax.f32 %v1256, 0.0
        %v1283 = vmax.f32 %v1257, 0.0
        %v1284 = vmax.f32 %v1258, 0.0
        %v1285 = vmax.f32 %v1259, 0.0
        %v1286 = vmax.f32 %v1260, 0.0
        %v1287 = vmax.f32 %v1261, 0.0
        %v1288 = vmax.f32 %v1262, 0.0
        %v1289 = vmax.f32 %v1263, 0.0
        %v1290 = vmax.f32 %v1264, 0.0
        %v1291 = vmax.f32 %v1265, 0.0
        %v1292 = vmax.f32 %v1266, 0.0
        %v1293 = vmax.f32 %v1267, 0.0
        %v1294 = vmax.f32 %v1268, 0.0
        %v1295 = vpack.c.bf16 %v449, %v447
        %v1296 = vpack.c.bf16 %v450, %v448
        %v1297 = vpack.c.bf16 %v453, %v451
        %v1298 = vpack.c.bf16 %v454, %v452
        %v1299 = vpack.c.bf16 %v457, %v455
        %v1300 = vpack.c.bf16 %v458, %v456
        %v1301 = vpack.c.bf16 %v461, %v459
        %v1302 = vpack.c.bf16 %v462, %v460
        %v1303 = vpack.c.bf16 %v465, %v463
        %v1304 = vpack.c.bf16 %v466, %v464
        %v1305 = vpack.c.bf16 %v469, %v467
        %v1306 = vpack.c.bf16 %v470, %v468
        %v1307 = vpack.c.bf16 %v471, %v471
        %v1308 = vpack.c.bf16 %v472, %v472
        %s1309 = scalar_lea.vmem [#allocation8], 512
        %v1310 = vld [vmem:[%s1309] sm:$0xff]
        %v1311 = vld [vmem:[%s1309 + $0x8] sm:$0xff]
        %v1312 = vld [vmem:[%s1309 + $0x10] sm:$0xff]
        %v1313 = vld [vmem:[%s1309 + $0x18] sm:$0xff]
        %v1314 = vld [vmem:[%s1309 + $0x20] sm:$0xff]
        %v1315 = vld [vmem:[%s1309 + $0x28] sm:$0xff]
        %v1316 = vld [vmem:[%s1309 + $0x30] sm:$0xff]
        %v1317 = vld [vmem:[%s1309 + $0x38] sm:$0xff]
        %v1318 = vld [vmem:[%s1309 + $0x40] sm:$0xff]
        %v1319 = vld [vmem:[%s1309 + $0x48] sm:$0xff]
        %v1320 = vld [vmem:[%s1309 + $0x50] sm:$0xff]
        %v1321 = vld [vmem:[%s1309 + $0x58] sm:$0xff]
        %v1322 = vld [vmem:[%s1309 + $0x60] sm:$0xff]
        %v1323 = vld [vmem:[%s1309 + $0x68] sm:$0xff]
        %v1324 = vld [vmem:[%s1309 + $0x70] sm:$0xff]
        %v1325 = vld [vmem:[%s1309 + $0x78] sm:$0xff]
        %v1326 = vld [vmem:[%s1309 + $0x80] sm:$0xff]
        %v1327 = vld [vmem:[%s1309 + $0x88] sm:$0xff]
        %v1328 = vld [vmem:[%s1309 + $0x90] sm:$0xff]
        %v1329 = vld [vmem:[%s1309 + $0x98] sm:$0xff]
        %v1330 = vld [vmem:[%s1309 + $0xa0] sm:$0xff]
        %v1331 = vld [vmem:[%s1309 + $0xa8] sm:$0xff]
        %v1332 = vld [vmem:[%s1309 + $0xb0] sm:$0xff]
        %v1333 = vld [vmem:[%s1309 + $0xb8] sm:$0xff]
        %v1334 = vld [vmem:[%s1309 + $0xc0] sm:$0xff]
        %v1335 = vld [vmem:[%s1309 + $0xc8] sm:$0xff]
        %v1336 = vld [vmem:[%s1309 + $0xd0] sm:$0xff]
        %v1337 = vld [vmem:[%s1309 + $0xd8] sm:$0xff]
        %v1338 = vld [vmem:[%s1309 + $0xe0] sm:$0xff]
        %v1339 = vld [vmem:[%s1309 + $0xe8] sm:$0xff]
        %v1340 = vld [vmem:[%s1309 + $0xf0] sm:$0xff]
        %v1341 = vld [vmem:[%s1309 + $0xf8] sm:$0xff]
        %v1374 = vunpack.c.l.b16 %v1310
        %v1375 = vunpack.c.h.b16 %v1310
        %v1376 = vunpack.c.l.b16 %v1311
        %v1377 = vunpack.c.h.b16 %v1311
        %v1378 = vunpack.c.l.b16 %v1312
        %v1379 = vunpack.c.h.b16 %v1312
        %v1380 = vunpack.c.l.b16 %v1313
        %v1381 = vunpack.c.h.b16 %v1313
        %v1382 = vunpack.c.l.b16 %v1314
        %v1383 = vunpack.c.h.b16 %v1314
        %v1384 = vunpack.c.l.b16 %v1315
        %v1385 = vunpack.c.h.b16 %v1315
        %v1386 = vunpack.c.l.b16 %v1316
        %v1387 = vunpack.c.h.b16 %v1316
        %v1388 = vunpack.c.l.b16 %v1317
        %v1389 = vunpack.c.h.b16 %v1317
        %v1390 = vunpack.c.l.b16 %v1318
        %v1391 = vunpack.c.h.b16 %v1318
        %v1392 = vunpack.c.l.b16 %v1319
        %v1393 = vunpack.c.h.b16 %v1319
        %v1394 = vunpack.c.l.b16 %v1320
        %v1395 = vunpack.c.h.b16 %v1320
        %v1396 = vunpack.c.l.b16 %v1321
        %v1397 = vunpack.c.h.b16 %v1321
        %v1398 = vunpack.c.l.b16 %v1322
        %v1399 = vunpack.c.h.b16 %v1322
        %v1400 = vunpack.c.l.b16 %v1323
        %v1401 = vunpack.c.h.b16 %v1323
        %v1402 = vunpack.c.l.b16 %v1324
        %v1403 = vunpack.c.h.b16 %v1324
        %v1404 = vunpack.c.l.b16 %v1325
        %v1405 = vunpack.c.h.b16 %v1325
        %v1406 = vunpack.c.l.b16 %v1326
        %v1407 = vunpack.c.h.b16 %v1326
        %v1408 = vunpack.c.l.b16 %v1327
        %v1409 = vunpack.c.h.b16 %v1327
        %v1410 = vunpack.c.l.b16 %v1328
        %v1411 = vunpack.c.h.b16 %v1328
        %v1412 = vunpack.c.l.b16 %v1329
        %v1413 = vunpack.c.h.b16 %v1329
        %v1414 = vunpack.c.l.b16 %v1330
        %v1415 = vunpack.c.h.b16 %v1330
        %v1416 = vunpack.c.l.b16 %v1331
        %v1417 = vunpack.c.h.b16 %v1331
        %v1418 = vunpack.c.l.b16 %v1332
        %v1419 = vunpack.c.h.b16 %v1332
        %v1420 = vunpack.c.l.b16 %v1333
        %v1421 = vunpack.c.h.b16 %v1333
        %v1422 = vunpack.c.l.b16 %v1334
        %v1423 = vunpack.c.h.b16 %v1334
        %v1424 = vunpack.c.l.b16 %v1335
        %v1425 = vunpack.c.h.b16 %v1335
        %v1426 = vunpack.c.l.b16 %v1336
        %v1427 = vunpack.c.h.b16 %v1336
        %v1428 = vunpack.c.l.b16 %v1337
        %v1429 = vunpack.c.h.b16 %v1337
        %v1430 = vunpack.c.l.b16 %v1338
        %v1431 = vunpack.c.h.b16 %v1338
        %v1432 = vunpack.c.l.b16 %v1339
        %v1433 = vunpack.c.h.b16 %v1339
        %v1434 = vunpack.c.l.b16 %v1340
        %v1435 = vunpack.c.h.b16 %v1340
        %v1436 = vunpack.c.l.b16 %v1341
        %v1437 = vunpack.c.h.b16 %v1341
        %v1438 = vpack.c.b16 %v1376, %v1374
        %v1439 = vpack.c.b16 %v1377, %v1375
        %v1440 = vpack.c.b16 %v1380, %v1378
        %v1441 = vpack.c.b16 %v1381, %v1379
        %v1442 = vpack.c.b16 %v1384, %v1382
        %v1443 = vpack.c.b16 %v1385, %v1383
        %v1444 = vpack.c.b16 %v1388, %v1386
        %v1445 = vpack.c.b16 %v1389, %v1387
        %v1446 = vpack.c.b16 %v1392, %v1390
        %v1447 = vpack.c.b16 %v1393, %v1391
        %v1448 = vpack.c.b16 %v1396, %v1394
        %v1449 = vpack.c.b16 %v1397, %v1395
        %v1450 = vpack.c.b16 %v1400, %v1398
        %v1451 = vpack.c.b16 %v1401, %v1399
        %v1452 = vpack.c.b16 %v1404, %v1402
        %v1453 = vpack.c.b16 %v1405, %v1403
        %v1454 = vpack.c.b16 %v1408, %v1406
        %v1455 = vpack.c.b16 %v1409, %v1407
        %v1456 = vpack.c.b16 %v1412, %v1410
        %v1457 = vpack.c.b16 %v1413, %v1411
        %v1458 = vpack.c.b16 %v1416, %v1414
        %v1459 = vpack.c.b16 %v1417, %v1415
        %v1460 = vpack.c.b16 %v1420, %v1418
        %v1461 = vpack.c.b16 %v1421, %v1419
        %v1462 = vpack.c.b16 %v1424, %v1422
        %v1463 = vpack.c.b16 %v1425, %v1423
        %v1464 = vpack.c.b16 %v1428, %v1426
        %v1465 = vpack.c.b16 %v1429, %v1427
        %v1466 = vpack.c.b16 %v1432, %v1430
        %v1467 = vpack.c.b16 %v1433, %v1431
        %v1468 = vpack.c.b16 %v1436, %v1434
        %v1469 = vpack.c.b16 %v1437, %v1435
        %1502 = vmatprep.subr.bf16.mxu0 %v1453
        %1503 = vmatpush1.bf16.msra.mxu0 %v1452
        %1504 = vmatprep.subr.bf16.mxu0 %v1451
        %1505 = vmatpush1.bf16.msra.mxu0 %v1450
        %1506 = vmatprep.subr.bf16.mxu0 %v1449
        %1507 = vmatpush1.bf16.msra.mxu0 %v1448
        %1508 = vmatprep.subr.bf16.mxu0 %v1447
        %1509 = vmatpush1.bf16.msra.mxu0 %v1446
        %1510 = vmatprep.subr.bf16.mxu0 %v1445
        %1511 = vmatpush1.bf16.msra.mxu0 %v1444
        %1512 = vmatprep.subr.bf16.mxu0 %v1443
        %1513 = vmatpush1.bf16.msra.mxu0 %v1442
        %1514 = vmatprep.subr.bf16.mxu0 %v1441
        %1515 = vmatpush1.bf16.msra.mxu0 %v1440
        %1516 = vmatprep.subr.bf16.mxu0 %v1439
        %1517 = vmatpush1.bf16.msra.mxu0 %v1438
        %1518 = vmatprep.subr.bf16.mxu0 %v1469
        %1519 = vmatpush2.bf16.msra.mxu0 %v1468
        %1520 = vmatprep.subr.bf16.mxu0 %v1467
        %1521 = vmatpush2.bf16.msra.mxu0 %v1466
        %1522 = vmatprep.subr.bf16.mxu0 %v1465
        %1523 = vmatpush2.bf16.msra.mxu0 %v1464
        %1524 = vmatprep.subr.bf16.mxu0 %v1463
        %1525 = vmatpush2.bf16.msra.mxu0 %v1462
        %1526 = vmatprep.subr.bf16.mxu0 %v1461
        %1527 = vmatpush2.bf16.msra.mxu0 %v1460
        %1528 = vmatprep.subr.bf16.mxu0 %v1459
        %1529 = vmatpush2.bf16.msra.mxu0 %v1458
        %1530 = vmatprep.subr.bf16.mxu0 %v1457
        %1531 = vmatpush2.bf16.msra.mxu0 %v1456
        %1532 = vmatprep.subr.bf16.mxu0 %v1455
        %1533 = vmatpush2.bf16.msra.mxu0 %v1454
        %1534 = vmatprep.mubr.bf16.mxu0 %v1296
        %1535 = vmatmul.mubr.bf16.gmra.mxu0 %v1295
        %v1536 = vpop.f32.mrf.mxu0
        %v1537 = vadd.f32 0.0, %v1536
        %v1538 = vpop.f32.mrf.mxu0
        %v1539 = vadd.f32 0.0, %v1538
        %v1540 = vpop.f32.mrf.mxu0
        %v1541 = vadd.f32 0.0, %v1540
        %v1542 = vpop.f32.mrf.mxu0
        %v1543 = vadd.f32 0.0, %v1542
        %1544 = vmatprep.mubr.bf16.mxu0 %v1298
        %1545 = vmatmul.mubr.bf16.gmra.mxu0 %v1297
        %v1546 = vpop.f32.mrf.mxu0
        %v1547 = vadd.f32 0.0, %v1546
        %v1548 = vpop.f32.mrf.mxu0
        %v1549 = vadd.f32 0.0, %v1548
        %v1550 = vpop.f32.mrf.mxu0
        %v1551 = vadd.f32 0.0, %v1550
        %v1552 = vpop.f32.mrf.mxu0
        %v1553 = vadd.f32 0.0, %v1552
        %1554 = vmatprep.mubr.bf16.mxu0 %v1300
        %1555 = vmatmul.mubr.bf16.gmra.mxu0 %v1299
        %v1556 = vpop.f32.mrf.mxu0
        %v1557 = vadd.f32 0.0, %v1556
        %v1558 = vpop.f32.mrf.mxu0
        %v1559 = vadd.f32 0.0, %v1558
        %v1560 = vpop.f32.mrf.mxu0
        %v1561 = vadd.f32 0.0, %v1560
        %v1562 = vpop.f32.mrf.mxu0
        %v1563 = vadd.f32 0.0, %v1562
        %1564 = vmatprep.mubr.bf16.mxu0 %v1302
        %1565 = vmatmul.mubr.bf16.gmra.mxu0 %v1301
        %v1566 = vpop.f32.mrf.mxu0
        %v1567 = vadd.f32 0.0, %v1566
        %v1568 = vpop.f32.mrf.mxu0
        %v1569 = vadd.f32 0.0, %v1568
        %v1570 = vpop.f32.mrf.mxu0
        %v1571 = vadd.f32 0.0, %v1570
        %v1572 = vpop.f32.mrf.mxu0
        %v1573 = vadd.f32 0.0, %v1572
        %1574 = vmatprep.mubr.bf16.mxu0 %v1304
        %1575 = vmatmul.mubr.bf16.gmra.mxu0 %v1303
        %v1576 = vpop.f32.mrf.mxu0
        %v1577 = vadd.f32 0.0, %v1576
        %v1578 = vpop.f32.mrf.mxu0
        %v1579 = vadd.f32 0.0, %v1578
        %v1580 = vpop.f32.mrf.mxu0
        %v1581 = vadd.f32 0.0, %v1580
        %v1582 = vpop.f32.mrf.mxu0
        %v1583 = vadd.f32 0.0, %v1582
        %1584 = vmatprep.mubr.bf16.mxu0 %v1306
        %1585 = vmatmul.mubr.bf16.gmra.mxu0 %v1305
        %v1586 = vpop.f32.mrf.mxu0
        %v1587 = vadd.f32 0.0, %v1586
        %v1588 = vpop.f32.mrf.mxu0
        %v1589 = vadd.f32 0.0, %v1588
        %v1590 = vpop.f32.mrf.mxu0
        %v1591 = vadd.f32 0.0, %v1590
        %v1592 = vpop.f32.mrf.mxu0
        %v1593 = vadd.f32 0.0, %v1592
        %1594 = vmatprep.mubr.bf16.mxu0 %v1308
        %1595 = vmatmul.mubr.bf16.gmra.mxu0 %v1307
        %v1596 = vpop.f32.mrf.mxu0
        %v1597 = vadd.f32 0.0, %v1596
        %v1598 = vpop.f32.mrf.mxu0
        %v1599 = vadd.f32 0.0, %v1598
        %v1600 = vpop.f32.mrf.mxu0
        %v1601 = vpop.f32.mrf.mxu0
        %1602 = vdwg.mxu0
        %s1603 = scalar_lea.vmem [#allocation10], 4
        %v1604 = vld [vmem:[%s1603] ss:$8 sm:$0x3]
        %v1606 = vlaneseq
        %v1607 = vshrl.u32 %v1606, 7
        %v1608 = vsub.s32 0, %v1607
        %v1609 = vrot.slane %v1604, %v1608
        %v1610 = vlaneseq
        %v1611 = vshrl.u32 %v1610, 7
        %v1612 = vsub.s32 1, %v1611
        %v1613 = vrot.slane %v1604, %v1612
        %v1616 = vmul.f32 %v1537, %v1609
        %v1617 = vmul.f32 %v1539, %v1613
        %v1618 = vmul.f32 %v1541, %v1609
        %v1619 = vmul.f32 %v1543, %v1613
        %v1620 = vmul.f32 %v1547, %v1609
        %v1621 = vmul.f32 %v1549, %v1613
        %v1622 = vmul.f32 %v1551, %v1609
        %v1623 = vmul.f32 %v1553, %v1613
        %v1624 = vmul.f32 %v1557, %v1609
        %v1625 = vmul.f32 %v1559, %v1613
        %v1626 = vmul.f32 %v1561, %v1609
        %v1627 = vmul.f32 %v1563, %v1613
        %v1628 = vmul.f32 %v1567, %v1609
        %v1629 = vmul.f32 %v1569, %v1613
        %v1630 = vmul.f32 %v1571, %v1609
        %v1631 = vmul.f32 %v1573, %v1613
        %v1632 = vmul.f32 %v1577, %v1609
        %v1633 = vmul.f32 %v1579, %v1613
        %v1634 = vmul.f32 %v1581, %v1609
        %v1635 = vmul.f32 %v1583, %v1613
        %v1636 = vmul.f32 %v1587, %v1609
        %v1637 = vmul.f32 %v1589, %v1613
        %v1638 = vmul.f32 %v1591, %v1609
        %v1639 = vmul.f32 %v1593, %v1613
        %v1640 = vmul.f32 %v1597, %v1609
        %v1641 = vmul.f32 %v1599, %v1613
        %s1642 = scalar_lea.vmem [#allocation10], 5
        %v1643 = vld [vmem:[%s1642] ss:$8 sm:$0x3]
        %v1645 = vlaneseq
        %v1646 = vshrl.u32 %v1645, 7
        %v1647 = vsub.s32 0, %v1646
        %v1648 = vrot.slane %v1643, %v1647
        %v1649 = vlaneseq
        %v1650 = vshrl.u32 %v1649, 7
        %v1651 = vsub.s32 1, %v1650
        %v1652 = vrot.slane %v1643, %v1651
        %v1655 = vadd.f32 %v1616, %v1648
        %v1656 = vadd.f32 %v1617, %v1652
        %v1657 = vadd.f32 %v1618, %v1648
        %v1658 = vadd.f32 %v1619, %v1652
        %v1659 = vadd.f32 %v1620, %v1648
        %v1660 = vadd.f32 %v1621, %v1652
        %v1661 = vadd.f32 %v1622, %v1648
        %v1662 = vadd.f32 %v1623, %v1652
        %v1663 = vadd.f32 %v1624, %v1648
        %v1664 = vadd.f32 %v1625, %v1652
        %v1665 = vadd.f32 %v1626, %v1648
        %v1666 = vadd.f32 %v1627, %v1652
        %v1667 = vadd.f32 %v1628, %v1648
        %v1668 = vadd.f32 %v1629, %v1652
        %v1669 = vadd.f32 %v1630, %v1648
        %v1670 = vadd.f32 %v1631, %v1652
        %v1671 = vadd.f32 %v1632, %v1648
        %v1672 = vadd.f32 %v1633, %v1652
        %v1673 = vadd.f32 %v1634, %v1648
        %v1674 = vadd.f32 %v1635, %v1652
        %v1675 = vadd.f32 %v1636, %v1648
        %v1676 = vadd.f32 %v1637, %v1652
        %v1677 = vadd.f32 %v1638, %v1648
        %v1678 = vadd.f32 %v1639, %v1652
        %v1679 = vadd.f32 %v1640, %v1648
        %v1680 = vadd.f32 %v1641, %v1652
        %v1681 = vmax.f32 %v1655, 0.0
        %v1682 = vmax.f32 %v1656, 0.0
        %v1683 = vmax.f32 %v1657, 0.0
        %v1684 = vmax.f32 %v1658, 0.0
        %v1685 = vmax.f32 %v1659, 0.0
        %v1686 = vmax.f32 %v1660, 0.0
        %v1687 = vmax.f32 %v1661, 0.0
        %v1688 = vmax.f32 %v1662, 0.0
        %v1689 = vmax.f32 %v1663, 0.0
        %v1690 = vmax.f32 %v1664, 0.0
        %v1691 = vmax.f32 %v1665, 0.0
        %v1692 = vmax.f32 %v1666, 0.0
        %v1693 = vmax.f32 %v1667, 0.0
        %v1694 = vmax.f32 %v1668, 0.0
        %v1695 = vmax.f32 %v1669, 0.0
        %v1696 = vmax.f32 %v1670, 0.0
        %v1697 = vmax.f32 %v1671, 0.0
        %v1698 = vmax.f32 %v1672, 0.0
        %v1699 = vmax.f32 %v1673, 0.0
        %v1700 = vmax.f32 %v1674, 0.0
        %v1701 = vmax.f32 %v1675, 0.0
        %v1702 = vmax.f32 %v1676, 0.0
        %v1703 = vmax.f32 %v1677, 0.0
        %v1704 = vmax.f32 %v1678, 0.0
        %v1705 = vmax.f32 %v1679, 0.0
        %v1706 = vmax.f32 %v1680, 0.0
        %s1707 = scalar_lea.vmem [#allocation10], 6
        %v1708 = vld [vmem:[%s1707] ss:$8 sm:$0x3]
        %v1710 = vlaneseq
        %v1711 = vshrl.u32 %v1710, 7
        %v1712 = vsub.s32 0, %v1711
        %v1713 = vrot.slane %v1708, %v1712
        %v1714 = vlaneseq
        %v1715 = vshrl.u32 %v1714, 7
        %v1716 = vsub.s32 1, %v1715
        %v1717 = vrot.slane %v1708, %v1716
        %v1720 = vmul.f32 %v395, %v1713
        %v1721 = vmul.f32 %v396, %v1717
        %v1722 = vmul.f32 %v397, %v1713
        %v1723 = vmul.f32 %v398, %v1717
        %v1724 = vmul.f32 %v399, %v1713
        %v1725 = vmul.f32 %v400, %v1717
        %v1726 = vmul.f32 %v401, %v1713
        %v1727 = vmul.f32 %v402, %v1717
        %v1728 = vmul.f32 %v403, %v1713
        %v1729 = vmul.f32 %v404, %v1717
        %v1730 = vmul.f32 %v405, %v1713
        %v1731 = vmul.f32 %v406, %v1717
        %v1732 = vmul.f32 %v407, %v1713
        %v1733 = vmul.f32 %v408, %v1717
        %v1734 = vmul.f32 %v409, %v1713
        %v1735 = vmul.f32 %v410, %v1717
        %v1736 = vmul.f32 %v411, %v1713
        %v1737 = vmul.f32 %v412, %v1717
        %v1738 = vmul.f32 %v413, %v1713
        %v1739 = vmul.f32 %v414, %v1717
        %v1740 = vmul.f32 %v415, %v1713
        %v1741 = vmul.f32 %v416, %v1717
        %v1742 = vmul.f32 %v417, %v1713
        %v1743 = vmul.f32 %v418, %v1717
        %v1744 = vmul.f32 %v419, %v1713
        %v1745 = vmul.f32 %v420, %v1717
        %v1746 = vadd.f32 %v1720, %v1721
        %1747 = vadd.xlane.f32.xlu0 %v1746
        %v1748 = vpop.xlane.xlu0 %1747
        %v1749 = vadd.f32 %v1722, %v1723
        %1750 = vadd.xlane.f32.xlu0 %v1749
        %v1751 = vpop.xlane.xlu0 %1750
        %v1752 = vadd.f32 %v1724, %v1725
        %1753 = vadd.xlane.f32.xlu0 %v1752
        %v1754 = vpop.xlane.xlu0 %1753
        %v1755 = vadd.f32 %v1726, %v1727
        %1756 = vadd.xlane.f32.xlu0 %v1755
        %v1757 = vpop.xlane.xlu0 %1756
        %v1758 = vadd.f32 %v1728, %v1729
        %1759 = vadd.xlane.f32.xlu0 %v1758
        %v1760 = vpop.xlane.xlu0 %1759
        %v1761 = vadd.f32 %v1730, %v1731
        %1762 = vadd.xlane.f32.xlu0 %v1761
        %v1763 = vpop.xlane.xlu0 %1762
        %v1764 = vadd.f32 %v1732, %v1733
        %1765 = vadd.xlane.f32.xlu0 %v1764
        %v1766 = vpop.xlane.xlu0 %1765
        %v1767 = vadd.f32 %v1734, %v1735
        %1768 = vadd.xlane.f32.xlu0 %v1767
        %v1769 = vpop.xlane.xlu0 %1768
        %v1770 = vadd.f32 %v1736, %v1737
        %1771 = vadd.xlane.f32.xlu0 %v1770
        %v1772 = vpop.xlane.xlu0 %1771
        %v1773 = vadd.f32 %v1738, %v1739
        %1774 = vadd.xlane.f32.xlu0 %v1773
        %v1775 = vpop.xlane.xlu0 %1774
        %v1776 = vadd.f32 %v1740, %v1741
        %1777 = vadd.xlane.f32.xlu0 %v1776
        %v1778 = vpop.xlane.xlu0 %1777
        %v1779 = vadd.f32 %v1742, %v1743
        %1780 = vadd.xlane.f32.xlu0 %v1779
        %v1781 = vpop.xlane.xlu0 %1780
        %v1782 = vadd.f32 %v1744, %v1745
        %1783 = vadd.xlane.f32.xlu0 %v1782
        %v1784 = vpop.xlane.xlu0 %1783
        %v1785 = vld [vmem:[#allocation10 + $0x10] ss:$0 sm:$0xff]
        %v1786 = vadd.f32 %v1748, %v1785
        %v1787 = vadd.f32 %v1751, %v1785
        %v1788 = vadd.f32 %v1754, %v1785
        %v1789 = vadd.f32 %v1757, %v1785
        %v1790 = vadd.f32 %v1760, %v1785
        %v1791 = vadd.f32 %v1763, %v1785
        %v1792 = vadd.f32 %v1766, %v1785
        %v1793 = vadd.f32 %v1769, %v1785
        %v1794 = vadd.f32 %v1772, %v1785
        %v1795 = vadd.f32 %v1775, %v1785
        %v1796 = vadd.f32 %v1778, %v1785
        %v1797 = vadd.f32 %v1781, %v1785
        %v1798 = vadd.f32 %v1784, %v1785
        %s1799 = scalar_lea.vmem [#allocation10], 7
        %v1800 = vld [vmem:[%s1799] ss:$8 sm:$0x3]
        %v1802 = vlaneseq
        %v1803 = vshrl.u32 %v1802, 7
        %v1804 = vsub.s32 0, %v1803
        %v1805 = vrot.slane %v1800, %v1804
        %v1806 = vlaneseq
        %v1807 = vshrl.u32 %v1806, 7
        %v1808 = vsub.s32 1, %v1807
        %v1809 = vrot.slane %v1800, %v1808
        %v1812 = vmul.f32 %v421, %v1805
        %v1813 = vmul.f32 %v422, %v1809
        %v1814 = vmul.f32 %v423, %v1805
        %v1815 = vmul.f32 %v424, %v1809
        %v1816 = vmul.f32 %v425, %v1805
        %v1817 = vmul.f32 %v426, %v1809
        %v1818 = vmul.f32 %v427, %v1805
        %v1819 = vmul.f32 %v428, %v1809
        %v1820 = vmul.f32 %v429, %v1805
        %v1821 = vmul.f32 %v430, %v1809
        %v1822 = vmul.f32 %v431, %v1805
        %v1823 = vmul.f32 %v432, %v1809
        %v1824 = vmul.f32 %v433, %v1805
        %v1825 = vmul.f32 %v434, %v1809
        %v1826 = vmul.f32 %v435, %v1805
        %v1827 = vmul.f32 %v436, %v1809
        %v1828 = vmul.f32 %v437, %v1805
        %v1829 = vmul.f32 %v438, %v1809
        %v1830 = vmul.f32 %v439, %v1805
        %v1831 = vmul.f32 %v440, %v1809
        %v1832 = vmul.f32 %v441, %v1805
        %v1833 = vmul.f32 %v442, %v1809
        %v1834 = vmul.f32 %v443, %v1805
        %v1835 = vmul.f32 %v444, %v1809
        %v1836 = vmul.f32 %v445, %v1805
        %v1837 = vmul.f32 %v446, %v1809
        %v1838 = vadd.f32 %v1812, %v1813
        %1839 = vadd.xlane.f32.xlu0 %v1838
        %v1840 = vpop.xlane.xlu0 %1839
        %v1841 = vadd.f32 %v1814, %v1815
        %1842 = vadd.xlane.f32.xlu0 %v1841
        %v1843 = vpop.xlane.xlu0 %1842
        %v1844 = vadd.f32 %v1816, %v1817
        %1845 = vadd.xlane.f32.xlu0 %v1844
        %v1846 = vpop.xlane.xlu0 %1845
        %v1847 = vadd.f32 %v1818, %v1819
        %1848 = vadd.xlane.f32.xlu0 %v1847
        %v1849 = vpop.xlane.xlu0 %1848
        %v1850 = vadd.f32 %v1820, %v1821
        %1851 = vadd.xlane.f32.xlu0 %v1850
        %v1852 = vpop.xlane.xlu0 %1851
        %v1853 = vadd.f32 %v1822, %v1823
        %1854 = vadd.xlane.f32.xlu0 %v1853
        %v1855 = vpop.xlane.xlu0 %1854
        %v1856 = vadd.f32 %v1824, %v1825
        %1857 = vadd.xlane.f32.xlu0 %v1856
        %v1858 = vpop.xlane.xlu0 %1857
        %v1859 = vadd.f32 %v1826, %v1827
        %1860 = vadd.xlane.f32.xlu0 %v1859
        %v1861 = vpop.xlane.xlu0 %1860
        %v1862 = vadd.f32 %v1828, %v1829
        %1863 = vadd.xlane.f32.xlu0 %v1862
        %v1864 = vpop.xlane.xlu0 %1863
        %v1865 = vadd.f32 %v1830, %v1831
        %1866 = vadd.xlane.f32.xlu0 %v1865
        %v1867 = vpop.xlane.xlu0 %1866
        %v1868 = vadd.f32 %v1832, %v1833
        %1869 = vadd.xlane.f32.xlu0 %v1868
        %v1870 = vpop.xlane.xlu0 %1869
        %v1871 = vadd.f32 %v1834, %v1835
        %1872 = vadd.xlane.f32.xlu0 %v1871
        %v1873 = vpop.xlane.xlu0 %1872
        %v1874 = vadd.f32 %v1836, %v1837
        %1875 = vadd.xlane.f32.xlu0 %v1874
        %v1876 = vpop.xlane.xlu0 %1875
        %v1877 = vld [vmem:[#allocation10 + $0x11] ss:$0 sm:$0xff]
        %v1878 = vadd.f32 %v1840, %v1877
        %v1879 = vadd.f32 %v1843, %v1877
        %v1880 = vadd.f32 %v1846, %v1877
        %v1881 = vadd.f32 %v1849, %v1877
        %v1882 = vadd.f32 %v1852, %v1877
        %v1883 = vadd.f32 %v1855, %v1877
        %v1884 = vadd.f32 %v1858, %v1877
        %v1885 = vadd.f32 %v1861, %v1877
        %v1886 = vadd.f32 %v1864, %v1877
        %v1887 = vadd.f32 %v1867, %v1877
        %v1888 = vadd.f32 %v1870, %v1877
        %v1889 = vadd.f32 %v1873, %v1877
        %v1890 = vadd.f32 %v1876, %v1877
        %v1891 = vsub.f32 0.0, %v1786
        %v1892 = vsub.f32 0.0, %v1787
        %v1893 = vsub.f32 0.0, %v1788
        %v1894 = vsub.f32 0.0, %v1789
        %v1895 = vsub.f32 0.0, %v1790
        %v1896 = vsub.f32 0.0, %v1791
        %v1897 = vsub.f32 0.0, %v1792
        %v1898 = vsub.f32 0.0, %v1793
        %v1899 = vsub.f32 0.0, %v1794
        %v1900 = vsub.f32 0.0, %v1795
        %v1901 = vsub.f32 0.0, %v1796
        %v1902 = vsub.f32 0.0, %v1797
        %v1903 = vsub.f32 0.0, %v1798
        %v1904 = vmul.f32 %v1891, 1.442695
        %v1905 = vpow.pop %v1904
        %v1906 = vmul.f32 %v1892, 1.442695
        %v1907 = vpow.pop %v1906
        %v1908 = vmul.f32 %v1893, 1.442695
        %v1909 = vpow.pop %v1908
        %v1910 = vmul.f32 %v1894, 1.442695
        %v1911 = vpow.pop %v1910
        %v1912 = vmul.f32 %v1895, 1.442695
        %v1913 = vpow.pop %v1912
        %v1914 = vmul.f32 %v1896, 1.442695
        %v1915 = vpow.pop %v1914
        %v1916 = vmul.f32 %v1897, 1.442695
        %v1917 = vpow.pop %v1916
        %v1918 = vmul.f32 %v1898, 1.442695
        %v1919 = vpow.pop %v1918
        %v1920 = vmul.f32 %v1899, 1.442695
        %v1921 = vpow.pop %v1920
        %v1922 = vmul.f32 %v1900, 1.442695
        %v1923 = vpow.pop %v1922
        %v1924 = vmul.f32 %v1901, 1.442695
        %v1925 = vpow.pop %v1924
        %v1926 = vmul.f32 %v1902, 1.442695
        %v1927 = vpow.pop %v1926
        %v1928 = vmul.f32 %v1903, 1.442695
        %v1929 = vpow.pop %v1928
        %v1930 = vadd.f32 %v1905, 1.0
        %v1931 = vadd.f32 %v1907, 1.0
        %v1932 = vadd.f32 %v1909, 1.0
        %v1933 = vadd.f32 %v1911, 1.0
        %v1934 = vadd.f32 %v1913, 1.0
        %v1935 = vadd.f32 %v1915, 1.0
        %v1936 = vadd.f32 %v1917, 1.0
        %v1937 = vadd.f32 %v1919, 1.0
        %v1938 = vadd.f32 %v1921, 1.0
        %v1939 = vadd.f32 %v1923, 1.0
        %v1940 = vadd.f32 %v1925, 1.0
        %v1941 = vadd.f32 %v1927, 1.0
        %v1942 = vadd.f32 %v1929, 1.0
        %v1943 = vrcp.pop %v1930
        %v1944 = vmul.f32 1.0, %v1943
        %v1945 = vrcp.pop %v1931
        %v1946 = vmul.f32 1.0, %v1945
        %v1947 = vrcp.pop %v1932
        %v1948 = vmul.f32 1.0, %v1947
        %v1949 = vrcp.pop %v1933
        %v1950 = vmul.f32 1.0, %v1949
        %v1951 = vrcp.pop %v1934
        %v1952 = vmul.f32 1.0, %v1951
        %v1953 = vrcp.pop %v1935
        %v1954 = vmul.f32 1.0, %v1953
        %v1955 = vrcp.pop %v1936
        %v1956 = vmul.f32 1.0, %v1955
        %v1957 = vrcp.pop %v1937
        %v1958 = vmul.f32 1.0, %v1957
        %v1959 = vrcp.pop %v1938
        %v1960 = vmul.f32 1.0, %v1959
        %v1961 = vrcp.pop %v1939
        %v1962 = vmul.f32 1.0, %v1961
        %v1963 = vrcp.pop %v1940
        %v1964 = vmul.f32 1.0, %v1963
        %v1965 = vrcp.pop %v1941
        %v1966 = vmul.f32 1.0, %v1965
        %v1967 = vrcp.pop %v1942
        %v1968 = vmul.f32 1.0, %v1967
        %v1969 = vsub.f32 0.0, %v1878
        %v1970 = vsub.f32 0.0, %v1879
        %v1971 = vsub.f32 0.0, %v1880
        %v1972 = vsub.f32 0.0, %v1881
        %v1973 = vsub.f32 0.0, %v1882
        %v1974 = vsub.f32 0.0, %v1883
        %v1975 = vsub.f32 0.0, %v1884
        %v1976 = vsub.f32 0.0, %v1885
        %v1977 = vsub.f32 0.0, %v1886
        %v1978 = vsub.f32 0.0, %v1887
        %v1979 = vsub.f32 0.0, %v1888
        %v1980 = vsub.f32 0.0, %v1889
        %v1981 = vsub.f32 0.0, %v1890
        %v1982 = vmul.f32 %v1969, 1.442695
        %v1983 = vpow.pop %v1982
        %v1984 = vmul.f32 %v1970, 1.442695
        %v1985 = vpow.pop %v1984
        %v1986 = vmul.f32 %v1971, 1.442695
        %v1987 = vpow.pop %v1986
        %v1988 = vmul.f32 %v1972, 1.442695
        %v1989 = vpow.pop %v1988
        %v1990 = vmul.f32 %v1973, 1.442695
        %v1991 = vpow.pop %v1990
        %v1992 = vmul.f32 %v1974, 1.442695
        %v1993 = vpow.pop %v1992
        %v1994 = vmul.f32 %v1975, 1.442695
        %v1995 = vpow.pop %v1994
        %v1996 = vmul.f32 %v1976, 1.442695
        %v1997 = vpow.pop %v1996
        %v1998 = vmul.f32 %v1977, 1.442695
        %v1999 = vpow.pop %v1998
        %v2000 = vmul.f32 %v1978, 1.442695
        %v2001 = vpow.pop %v2000
        %v2002 = vmul.f32 %v1979, 1.442695
        %v2003 = vpow.pop %v2002
        %v2004 = vmul.f32 %v1980, 1.442695
        %v2005 = vpow.pop %v2004
        %v2006 = vmul.f32 %v1981, 1.442695
        %v2007 = vpow.pop %v2006
        %v2008 = vadd.f32 %v1983, 1.0
        %v2009 = vadd.f32 %v1985, 1.0
        %v2010 = vadd.f32 %v1987, 1.0
        %v2011 = vadd.f32 %v1989, 1.0
        %v2012 = vadd.f32 %v1991, 1.0
        %v2013 = vadd.f32 %v1993, 1.0
        %v2014 = vadd.f32 %v1995, 1.0
        %v2015 = vadd.f32 %v1997, 1.0
        %v2016 = vadd.f32 %v1999, 1.0
        %v2017 = vadd.f32 %v2001, 1.0
        %v2018 = vadd.f32 %v2003, 1.0
        %v2019 = vadd.f32 %v2005, 1.0
        %v2020 = vadd.f32 %v2007, 1.0
        %v2021 = vrcp.pop %v2008
        %v2022 = vmul.f32 1.0, %v2021
        %v2023 = vrcp.pop %v2009
        %v2024 = vmul.f32 1.0, %v2023
        %v2025 = vrcp.pop %v2010
        %v2026 = vmul.f32 1.0, %v2025
        %v2027 = vrcp.pop %v2011
        %v2028 = vmul.f32 1.0, %v2027
        %v2029 = vrcp.pop %v2012
        %v2030 = vmul.f32 1.0, %v2029
        %v2031 = vrcp.pop %v2013
        %v2032 = vmul.f32 1.0, %v2031
        %v2033 = vrcp.pop %v2014
        %v2034 = vmul.f32 1.0, %v2033
        %v2035 = vrcp.pop %v2015
        %v2036 = vmul.f32 1.0, %v2035
        %v2037 = vrcp.pop %v2016
        %v2038 = vmul.f32 1.0, %v2037
        %v2039 = vrcp.pop %v2017
        %v2040 = vmul.f32 1.0, %v2039
        %v2041 = vrcp.pop %v2018
        %v2042 = vmul.f32 1.0, %v2041
        %v2043 = vrcp.pop %v2019
        %v2044 = vmul.f32 1.0, %v2043
        %v2045 = vrcp.pop %v2020
        %v2046 = vmul.f32 1.0, %v2045
        %2048 = vset.pattern.permute.xlu0 0
        %2049 = vperm.xlu0 %2048, %v1944
        %v2050 = vpop.permute.xlu0 %2049
        %2053 = vset.pattern.permute.xlu0 0
        %2054 = vperm.xlu0 %2053, %v1946
        %v2055 = vpop.permute.xlu0 %2054
        %2058 = vset.pattern.permute.xlu0 0
        %2059 = vperm.xlu0 %2058, %v1948
        %v2060 = vpop.permute.xlu0 %2059
        %2063 = vset.pattern.permute.xlu0 0
        %2064 = vperm.xlu0 %2063, %v1950
        %v2065 = vpop.permute.xlu0 %2064
        %2068 = vset.pattern.permute.xlu0 0
        %2069 = vperm.xlu0 %2068, %v1952
        %v2070 = vpop.permute.xlu0 %2069
        %2073 = vset.pattern.permute.xlu0 0
        %2074 = vperm.xlu0 %2073, %v1954
        %v2075 = vpop.permute.xlu0 %2074
        %2078 = vset.pattern.permute.xlu0 0
        %2079 = vperm.xlu0 %2078, %v1956
        %v2080 = vpop.permute.xlu0 %2079
        %2083 = vset.pattern.permute.xlu0 0
        %2084 = vperm.xlu0 %2083, %v1958
        %v2085 = vpop.permute.xlu0 %2084
        %2088 = vset.pattern.permute.xlu0 0
        %2089 = vperm.xlu0 %2088, %v1960
        %v2090 = vpop.permute.xlu0 %2089
        %2093 = vset.pattern.permute.xlu0 0
        %2094 = vperm.xlu0 %2093, %v1962
        %v2095 = vpop.permute.xlu0 %2094
        %2098 = vset.pattern.permute.xlu0 0
        %2099 = vperm.xlu0 %2098, %v1964
        %v2100 = vpop.permute.xlu0 %2099
        %2103 = vset.pattern.permute.xlu0 0
        %2104 = vperm.xlu0 %2103, %v1966
        %v2105 = vpop.permute.xlu0 %2104
        %2108 = vset.pattern.permute.xlu0 0
        %2109 = vperm.xlu0 %2108, %v1968
        %v2110 = vpop.permute.xlu0 %2109
        %v2112 = vmul.f32 %v857, %v2050
        %v2113 = vmul.f32 %v858, %v2050
        %v2114 = vmul.f32 %v859, %v2055
        %v2115 = vmul.f32 %v860, %v2055
        %v2116 = vmul.f32 %v861, %v2060
        %v2117 = vmul.f32 %v862, %v2060
        %v2118 = vmul.f32 %v863, %v2065
        %v2119 = vmul.f32 %v864, %v2065
        %v2120 = vmul.f32 %v865, %v2070
        %v2121 = vmul.f32 %v866, %v2070
        %v2122 = vmul.f32 %v867, %v2075
        %v2123 = vmul.f32 %v868, %v2075
        %v2124 = vmul.f32 %v869, %v2080
        %v2125 = vmul.f32 %v870, %v2080
        %v2126 = vmul.f32 %v871, %v2085
        %v2127 = vmul.f32 %v872, %v2085
        %v2128 = vmul.f32 %v873, %v2090
        %v2129 = vmul.f32 %v874, %v2090
        %v2130 = vmul.f32 %v875, %v2095
        %v2131 = vmul.f32 %v876, %v2095
        %v2132 = vmul.f32 %v877, %v2100
        %v2133 = vmul.f32 %v878, %v2100
        %v2134 = vmul.f32 %v879, %v2105
        %v2135 = vmul.f32 %v880, %v2105
        %v2136 = vmul.f32 %v881, %v2110
        %v2137 = vmul.f32 %v882, %v2110
        %v2138 = vsub.f32 1.0, %v1944
        %v2139 = vsub.f32 1.0, %v1946
        %v2140 = vsub.f32 1.0, %v1948
        %v2141 = vsub.f32 1.0, %v1950
        %v2142 = vsub.f32 1.0, %v1952
        %v2143 = vsub.f32 1.0, %v1954
        %v2144 = vsub.f32 1.0, %v1956
        %v2145 = vsub.f32 1.0, %v1958
        %v2146 = vsub.f32 1.0, %v1960
        %v2147 = vsub.f32 1.0, %v1962
        %v2148 = vsub.f32 1.0, %v1964
        %v2149 = vsub.f32 1.0, %v1966
        %v2150 = vsub.f32 1.0, %v1968
        %2152 = vset.pattern.permute.xlu0 0
        %2153 = vperm.xlu0 %2152, %v2138
        %v2154 = vpop.permute.xlu0 %2153
        %2157 = vset.pattern.permute.xlu0 0
        %2158 = vperm.xlu0 %2157, %v2139
        %v2159 = vpop.permute.xlu0 %2158
        %2162 = vset.pattern.permute.xlu0 0
        %2163 = vperm.xlu0 %2162, %v2140
        %v2164 = vpop.permute.xlu0 %2163
        %2167 = vset.pattern.permute.xlu0 0
        %2168 = vperm.xlu0 %2167, %v2141
        %v2169 = vpop.permute.xlu0 %2168
        %2172 = vset.pattern.permute.xlu0 0
        %2173 = vperm.xlu0 %2172, %v2142
        %v2174 = vpop.permute.xlu0 %2173
        %2177 = vset.pattern.permute.xlu0 0
        %2178 = vperm.xlu0 %2177, %v2143
        %v2179 = vpop.permute.xlu0 %2178
        %2182 = vset.pattern.permute.xlu0 0
        %2183 = vperm.xlu0 %2182, %v2144
        %v2184 = vpop.permute.xlu0 %2183
        %2187 = vset.pattern.permute.xlu0 0
        %2188 = vperm.xlu0 %2187, %v2145
        %v2189 = vpop.permute.xlu0 %2188
        %2192 = vset.pattern.permute.xlu0 0
        %2193 = vperm.xlu0 %2192, %v2146
        %v2194 = vpop.permute.xlu0 %2193
        %2197 = vset.pattern.permute.xlu0 0
        %2198 = vperm.xlu0 %2197, %v2147
        %v2199 = vpop.permute.xlu0 %2198
        %2202 = vset.pattern.permute.xlu0 0
        %2203 = vperm.xlu0 %2202, %v2148
        %v2204 = vpop.permute.xlu0 %2203
        %2207 = vset.pattern.permute.xlu0 0
        %2208 = vperm.xlu0 %2207, %v2149
        %v2209 = vpop.permute.xlu0 %2208
        %2212 = vset.pattern.permute.xlu0 0
        %2213 = vperm.xlu0 %2212, %v2150
        %v2214 = vpop.permute.xlu0 %2213
        %v2216 = vmul.f32 %v1681, %v2154
        %v2217 = vmul.f32 %v1682, %v2154
        %v2218 = vmul.f32 %v1683, %v2159
        %v2219 = vmul.f32 %v1684, %v2159
        %v2220 = vmul.f32 %v1685, %v2164
        %v2221 = vmul.f32 %v1686, %v2164
        %v2222 = vmul.f32 %v1687, %v2169
        %v2223 = vmul.f32 %v1688, %v2169
        %v2224 = vmul.f32 %v1689, %v2174
        %v2225 = vmul.f32 %v1690, %v2174
        %v2226 = vmul.f32 %v1691, %v2179
        %v2227 = vmul.f32 %v1692, %v2179
        %v2228 = vmul.f32 %v1693, %v2184
        %v2229 = vmul.f32 %v1694, %v2184
        %v2230 = vmul.f32 %v1695, %v2189
        %v2231 = vmul.f32 %v1696, %v2189
        %v2232 = vmul.f32 %v1697, %v2194
        %v2233 = vmul.f32 %v1698, %v2194
        %v2234 = vmul.f32 %v1699, %v2199
        %v2235 = vmul.f32 %v1700, %v2199
        %v2236 = vmul.f32 %v1701, %v2204
        %v2237 = vmul.f32 %v1702, %v2204
        %v2238 = vmul.f32 %v1703, %v2209
        %v2239 = vmul.f32 %v1704, %v2209
        %v2240 = vmul.f32 %v1705, %v2214
        %v2241 = vmul.f32 %v1706, %v2214
        %v2242 = vadd.f32 %v2112, %v2216
        %v2243 = vadd.f32 %v2113, %v2217
        %v2244 = vadd.f32 %v2114, %v2218
        %v2245 = vadd.f32 %v2115, %v2219
        %v2246 = vadd.f32 %v2116, %v2220
        %v2247 = vadd.f32 %v2117, %v2221
        %v2248 = vadd.f32 %v2118, %v2222
        %v2249 = vadd.f32 %v2119, %v2223
        %v2250 = vadd.f32 %v2120, %v2224
        %v2251 = vadd.f32 %v2121, %v2225
        %v2252 = vadd.f32 %v2122, %v2226
        %v2253 = vadd.f32 %v2123, %v2227
        %v2254 = vadd.f32 %v2124, %v2228
        %v2255 = vadd.f32 %v2125, %v2229
        %v2256 = vadd.f32 %v2126, %v2230
        %v2257 = vadd.f32 %v2127, %v2231
        %v2258 = vadd.f32 %v2128, %v2232
        %v2259 = vadd.f32 %v2129, %v2233
        %v2260 = vadd.f32 %v2130, %v2234
        %v2261 = vadd.f32 %v2131, %v2235
        %v2262 = vadd.f32 %v2132, %v2236
        %v2263 = vadd.f32 %v2133, %v2237
        %v2264 = vadd.f32 %v2134, %v2238
        %v2265 = vadd.f32 %v2135, %v2239
        %v2266 = vadd.f32 %v2136, %v2240
        %v2267 = vadd.f32 %v2137, %v2241
        %2268 = vst [vmem:[%s382] sm:$0xff] %v2242
        %2269 = vst [vmem:[%s382 + $0x8] sm:$0xff] %v2243
        %2270 = vst [vmem:[%s382 + $0x10] sm:$0xff] %v2244
        %2271 = vst [vmem:[%s382 + $0x18] sm:$0xff] %v2245
        %2272 = vst [vmem:[%s382 + $0x20] sm:$0xff] %v2246
        %2273 = vst [vmem:[%s382 + $0x28] sm:$0xff] %v2247
        %2274 = vst [vmem:[%s382 + $0x30] sm:$0xff] %v2248
        %2275 = vst [vmem:[%s382 + $0x38] sm:$0xff] %v2249
        %2276 = vst [vmem:[%s382 + $0x40] sm:$0xff] %v2250
        %2277 = vst [vmem:[%s382 + $0x48] sm:$0xff] %v2251
        %2278 = vst [vmem:[%s382 + $0x50] sm:$0xff] %v2252
        %2279 = vst [vmem:[%s382 + $0x58] sm:$0xff] %v2253
        %2280 = vst [vmem:[%s382 + $0x60] sm:$0xff] %v2254
        %2281 = vst [vmem:[%s382 + $0x68] sm:$0xff] %v2255
        %2282 = vst [vmem:[%s382 + $0x70] sm:$0xff] %v2256
        %2283 = vst [vmem:[%s382 + $0x78] sm:$0xff] %v2257
        %2284 = vst [vmem:[%s382 + $0x80] sm:$0xff] %v2258
        %2285 = vst [vmem:[%s382 + $0x88] sm:$0xff] %v2259
        %2286 = vst [vmem:[%s382 + $0x90] sm:$0xff] %v2260
        %2287 = vst [vmem:[%s382 + $0x98] sm:$0xff] %v2261
        %2288 = vst [vmem:[%s382 + $0xa0] sm:$0xff] %v2262
        %2289 = vst [vmem:[%s382 + $0xa8] sm:$0xff] %v2263
        %2290 = vst [vmem:[%s382 + $0xb0] sm:$0xff] %v2264
        %2291 = vst [vmem:[%s382 + $0xb8] sm:$0xff] %v2265
        %2292 = vst [vmem:[%s382 + $0xc0] sm:$0xff] %v2266
        %2293 = vst [vmem:[%s382 + $0xc8] sm:$0xff] %v2267
        %2295 = vset.pattern.permute.xlu0 0
        %2296 = vperm.xlu0 %2295, %v2022
        %v2297 = vpop.permute.xlu0 %2296
        %2300 = vset.pattern.permute.xlu0 0
        %2301 = vperm.xlu0 %2300, %v2024
        %v2302 = vpop.permute.xlu0 %2301
        %2305 = vset.pattern.permute.xlu0 0
        %2306 = vperm.xlu0 %2305, %v2026
        %v2307 = vpop.permute.xlu0 %2306
        %2310 = vset.pattern.permute.xlu0 0
        %2311 = vperm.xlu0 %2310, %v2028
        %v2312 = vpop.permute.xlu0 %2311
        %2315 = vset.pattern.permute.xlu0 0
        %2316 = vperm.xlu0 %2315, %v2030
        %v2317 = vpop.permute.xlu0 %2316
        %2320 = vset.pattern.permute.xlu0 0
        %2321 = vperm.xlu0 %2320, %v2032
        %v2322 = vpop.permute.xlu0 %2321
        %2325 = vset.pattern.permute.xlu0 0
        %2326 = vperm.xlu0 %2325, %v2034
        %v2327 = vpop.permute.xlu0 %2326
        %2330 = vset.pattern.permute.xlu0 0
        %2331 = vperm.xlu0 %2330, %v2036
        %v2332 = vpop.permute.xlu0 %2331
        %2335 = vset.pattern.permute.xlu0 0
        %2336 = vperm.xlu0 %2335, %v2038
        %v2337 = vpop.permute.xlu0 %2336
        %2340 = vset.pattern.permute.xlu0 0
        %2341 = vperm.xlu0 %2340, %v2040
        %v2342 = vpop.permute.xlu0 %2341
        %2345 = vset.pattern.permute.xlu0 0
        %2346 = vperm.xlu0 %2345, %v2042
        %v2347 = vpop.permute.xlu0 %2346
        %2350 = vset.pattern.permute.xlu0 0
        %2351 = vperm.xlu0 %2350, %v2044
        %v2352 = vpop.permute.xlu0 %2351
        %2355 = vset.pattern.permute.xlu0 0
        %2356 = vperm.xlu0 %2355, %v2046
        %v2357 = vpop.permute.xlu0 %2356
        %v2359 = vmul.f32 %v1269, %v2297
        %v2360 = vmul.f32 %v1270, %v2297
        %v2361 = vmul.f32 %v1271, %v2302
        %v2362 = vmul.f32 %v1272, %v2302
        %v2363 = vmul.f32 %v1273, %v2307
        %v2364 = vmul.f32 %v1274, %v2307
        %v2365 = vmul.f32 %v1275, %v2312
        %v2366 = vmul.f32 %v1276, %v2312
        %v2367 = vmul.f32 %v1277, %v2317
        %v2368 = vmul.f32 %v1278, %v2317
        %v2369 = vmul.f32 %v1279, %v2322
        %v2370 = vmul.f32 %v1280, %v2322
        %v2371 = vmul.f32 %v1281, %v2327
        %v2372 = vmul.f32 %v1282, %v2327
        %v2373 = vmul.f32 %v1283, %v2332
        %v2374 = vmul.f32 %v1284, %v2332
        %v2375 = vmul.f32 %v1285, %v2337
        %v2376 = vmul.f32 %v1286, %v2337
        %v2377 = vmul.f32 %v1287, %v2342
        %v2378 = vmul.f32 %v1288, %v2342
        %v2379 = vmul.f32 %v1289, %v2347
        %v2380 = vmul.f32 %v1290, %v2347
        %v2381 = vmul.f32 %v1291, %v2352
        %v2382 = vmul.f32 %v1292, %v2352
        %v2383 = vmul.f32 %v1293, %v2357
        %v2384 = vmul.f32 %v1294, %v2357
        %v2385 = vsub.f32 1.0, %v2022
        %v2386 = vsub.f32 1.0, %v2024
        %v2387 = vsub.f32 1.0, %v2026
        %v2388 = vsub.f32 1.0, %v2028
        %v2389 = vsub.f32 1.0, %v2030
        %v2390 = vsub.f32 1.0, %v2032
        %v2391 = vsub.f32 1.0, %v2034
        %v2392 = vsub.f32 1.0, %v2036
        %v2393 = vsub.f32 1.0, %v2038
        %v2394 = vsub.f32 1.0, %v2040
        %v2395 = vsub.f32 1.0, %v2042
        %v2396 = vsub.f32 1.0, %v2044
        %v2397 = vsub.f32 1.0, %v2046
        %2399 = vset.pattern.permute.xlu0 0
        %2400 = vperm.xlu0 %2399, %v2385
        %v2401 = vpop.permute.xlu0 %2400
        %2404 = vset.pattern.permute.xlu0 0
        %2405 = vperm.xlu0 %2404, %v2386
        %v2406 = vpop.permute.xlu0 %2405
        %2409 = vset.pattern.permute.xlu0 0
        %2410 = vperm.xlu0 %2409, %v2387
        %v2411 = vpop.permute.xlu0 %2410
        %2414 = vset.pattern.permute.xlu0 0
        %2415 = vperm.xlu0 %2414, %v2388
        %v2416 = vpop.permute.xlu0 %2415
        %2419 = vset.pattern.permute.xlu0 0
        %2420 = vperm.xlu0 %2419, %v2389
        %v2421 = vpop.permute.xlu0 %2420
        %2424 = vset.pattern.permute.xlu0 0
        %2425 = vperm.xlu0 %2424, %v2390
        %v2426 = vpop.permute.xlu0 %2425
        %2429 = vset.pattern.permute.xlu0 0
        %2430 = vperm.xlu0 %2429, %v2391
        %v2431 = vpop.permute.xlu0 %2430
        %2434 = vset.pattern.permute.xlu0 0
        %2435 = vperm.xlu0 %2434, %v2392
        %v2436 = vpop.permute.xlu0 %2435
        %2439 = vset.pattern.permute.xlu0 0
        %2440 = vperm.xlu0 %2439, %v2393
        %v2441 = vpop.permute.xlu0 %2440
        %2444 = vset.pattern.permute.xlu0 0
        %2445 = vperm.xlu0 %2444, %v2394
        %v2446 = vpop.permute.xlu0 %2445
        %2449 = vset.pattern.permute.xlu0 0
        %2450 = vperm.xlu0 %2449, %v2395
        %v2451 = vpop.permute.xlu0 %2450
        %2454 = vset.pattern.permute.xlu0 0
        %2455 = vperm.xlu0 %2454, %v2396
        %v2456 = vpop.permute.xlu0 %2455
        %2459 = vset.pattern.permute.xlu0 0
        %2460 = vperm.xlu0 %2459, %v2397
        %v2461 = vpop.permute.xlu0 %2460
        %v2463 = vmul.f32 %v1681, %v2401
        %v2464 = vmul.f32 %v1682, %v2401
        %v2465 = vmul.f32 %v1683, %v2406
        %v2466 = vmul.f32 %v1684, %v2406
        %v2467 = vmul.f32 %v1685, %v2411
        %v2468 = vmul.f32 %v1686, %v2411
        %v2469 = vmul.f32 %v1687, %v2416
        %v2470 = vmul.f32 %v1688, %v2416
        %v2471 = vmul.f32 %v1689, %v2421
        %v2472 = vmul.f32 %v1690, %v2421
        %v2473 = vmul.f32 %v1691, %v2426
        %v2474 = vmul.f32 %v1692, %v2426
        %v2475 = vmul.f32 %v1693, %v2431
        %v2476 = vmul.f32 %v1694, %v2431
        %v2477 = vmul.f32 %v1695, %v2436
        %v2478 = vmul.f32 %v1696, %v2436
        %v2479 = vmul.f32 %v1697, %v2441
        %v2480 = vmul.f32 %v1698, %v2441
        %v2481 = vmul.f32 %v1699, %v2446
        %v2482 = vmul.f32 %v1700, %v2446
        %v2483 = vmul.f32 %v1701, %v2451
        %v2484 = vmul.f32 %v1702, %v2451
        %v2485 = vmul.f32 %v1703, %v2456
        %v2486 = vmul.f32 %v1704, %v2456
        %v2487 = vmul.f32 %v1705, %v2461
        %v2488 = vmul.f32 %v1706, %v2461
        %v2489 = vadd.f32 %v2359, %v2463
        %v2490 = vadd.f32 %v2360, %v2464
        %v2491 = vadd.f32 %v2361, %v2465
        %v2492 = vadd.f32 %v2362, %v2466
        %v2493 = vadd.f32 %v2363, %v2467
        %v2494 = vadd.f32 %v2364, %v2468
        %v2495 = vadd.f32 %v2365, %v2469
        %v2496 = vadd.f32 %v2366, %v2470
        %v2497 = vadd.f32 %v2367, %v2471
        %v2498 = vadd.f32 %v2368, %v2472
        %v2499 = vadd.f32 %v2369, %v2473
        %v2500 = vadd.f32 %v2370, %v2474
        %v2501 = vadd.f32 %v2371, %v2475
        %v2502 = vadd.f32 %v2372, %v2476
        %v2503 = vadd.f32 %v2373, %v2477
        %v2504 = vadd.f32 %v2374, %v2478
        %v2505 = vadd.f32 %v2375, %v2479
        %v2506 = vadd.f32 %v2376, %v2480
        %v2507 = vadd.f32 %v2377, %v2481
        %v2508 = vadd.f32 %v2378, %v2482
        %v2509 = vadd.f32 %v2379, %v2483
        %v2510 = vadd.f32 %v2380, %v2484
        %v2511 = vadd.f32 %v2381, %v2485
        %v2512 = vadd.f32 %v2382, %v2486
        %v2513 = vadd.f32 %v2383, %v2487
        %v2514 = vadd.f32 %v2384, %v2488
        %2515 = vst [vmem:[%s389] sm:$0xff] %v2489
        %2516 = vst [vmem:[%s389 + $0x8] sm:$0xff] %v2490
        %2517 = vst [vmem:[%s389 + $0x10] sm:$0xff] %v2491
        %2518 = vst [vmem:[%s389 + $0x18] sm:$0xff] %v2492
        %2519 = vst [vmem:[%s389 + $0x20] sm:$0xff] %v2493
        %2520 = vst [vmem:[%s389 + $0x28] sm:$0xff] %v2494
        %2521 = vst [vmem:[%s389 + $0x30] sm:$0xff] %v2495
        %2522 = vst [vmem:[%s389 + $0x38] sm:$0xff] %v2496
        %2523 = vst [vmem:[%s389 + $0x40] sm:$0xff] %v2497
        %2524 = vst [vmem:[%s389 + $0x48] sm:$0xff] %v2498
        %2525 = vst [vmem:[%s389 + $0x50] sm:$0xff] %v2499
        %2526 = vst [vmem:[%s389 + $0x58] sm:$0xff] %v2500
        %2527 = vst [vmem:[%s389 + $0x60] sm:$0xff] %v2501
        %2528 = vst [vmem:[%s389 + $0x68] sm:$0xff] %v2502
        %2529 = vst [vmem:[%s389 + $0x70] sm:$0xff] %v2503
        %2530 = vst [vmem:[%s389 + $0x78] sm:$0xff] %v2504
        %2531 = vst [vmem:[%s389 + $0x80] sm:$0xff] %v2505
        %2532 = vst [vmem:[%s389 + $0x88] sm:$0xff] %v2506
        %2533 = vst [vmem:[%s389 + $0x90] sm:$0xff] %v2507
        %2534 = vst [vmem:[%s389 + $0x98] sm:$0xff] %v2508
        %2535 = vst [vmem:[%s389 + $0xa0] sm:$0xff] %v2509
        %2536 = vst [vmem:[%s389 + $0xa8] sm:$0xff] %v2510
        %2537 = vst [vmem:[%s389 + $0xb0] sm:$0xff] %v2511
        %2538 = vst [vmem:[%s389 + $0xb8] sm:$0xff] %v2512
        %2539 = vst [vmem:[%s389 + $0xc0] sm:$0xff] %v2513
        %2540 = vst [vmem:[%s389 + $0xc8] sm:$0xff] %v2514
        %s2541 = sand.u32 %s159, 1
        %s2542 = scalar_lea.sflag [#allocation4], %s2541
        %s2543 = sand.u32 %s159, 1
        %s2544 = smul.addr %s2543, 208
        %s2545 = scalar_lea.vmem [#allocation11], %s2544
        %s2546 = sand.u32 %s185, 1
        %s2547 = scalar_lea.sflag [#allocation13], %s2546
        %s2548 = sand.u32 %s185, 1
        %s2549 = smul.addr %s2548, 208
        %s2550 = scalar_lea.vmem [#allocation12], %s2549
        // Predicated region
        $region61: #{tpu_custom_call.1} parent=39 // pred_check
          %p2551 = pneg %p169
        $region62: #{tpu_custom_call.1} parent=39 // pred_check_branch
          %2553 = sbr.rel (%p2551) target = $region64
        $region63: #{tpu_custom_call.1} parent=39 // pred_region
          %s2554 = smul.u32 13, %s31
          %s2556 = ssub.s32 3328, 3328
          %2557 = vsyncadd %s2542, %s2556
          %s2558 = smul.addr %s2554, 2
          %s2559 = smul.addr %s2558, 128
          %s2560 = scalar_lea.hbm %s5, %s2559
          %s2561 = sshll.u32 %s2545, 4
          %s2562 = int_to_ptr.vmem [resolvable:$true] %s2561
          %2567 = dma.vmem_to_hbm [thread:$0]  %s2562, 3328, %s2560, %s2542, 256, 256, 16
        $region64: #{tpu_custom_call.1} parent=39 // pred_fallthru
          _
        // Predicated region
        $region65: #{tpu_custom_call.1} parent=39 // pred_check
          %p2568 = pneg %p195
        $region66: #{tpu_custom_call.1} parent=39 // pred_check_branch
          %2570 = sbr.rel (%p2568) target = $region68
        $region67: #{tpu_custom_call.1} parent=39 // pred_region
          %s2571 = smul.u32 13, %s31
          %s2573 = ssub.s32 3328, 3328
          %2574 = vsyncadd %s2547, %s2573
          %s2575 = smul.addr %s2571, 2
          %s2576 = smul.addr %s2575, 128
          %s2577 = scalar_lea.hbm %s6, %s2576
          %s2578 = sshll.u32 %s2550, 4
          %s2579 = int_to_ptr.vmem [resolvable:$true] %s2578
          %2584 = dma.vmem_to_hbm [thread:$0]  %s2579, 3328, %s2577, %s2547, 256, 256, 16
        $region68: #{tpu_custom_call.1} parent=39 // pred_fallthru
          _
      $region40: #{tpu_custom_call.1} parent=5 // pred_fallthru
        _
      %p2585 = scmp.le.s32.totalorder 2, %s26
      // Predicated region
      $region69: #{tpu_custom_call.1} parent=5 // pred_check
        %p2586 = pneg %p2585
      $region70: #{tpu_custom_call.1} parent=5 // pred_check_branch
        %2588 = sbr.rel (%p2586) target = $region72
      $region71: #{tpu_custom_call.1} parent=5 // pred_region
        %s2589 = ssub.s32 %s26, 2
        // Predicated region
        $region73: #{tpu_custom_call.1} parent=71 // pred_check
          %p2590 = pneg %p175
        $region74: #{tpu_custom_call.1} parent=71 // pred_check_branch
          %2592 = sbr.rel (%p2590) target = $region76
        $region75: #{tpu_custom_call.1} parent=71 // pred_region
          %s2593 = sand.u32 %s160, 1
          %s2594 = scalar_lea.sflag [#allocation4], %s2593
          %s2595 = sand.u32 %s160, 1
          %s2596 = smul.addr %s2595, 208
          %s2597 = scalar_lea.vmem [#allocation11], %s2596
          %2598 = dma.done %s2594, 3328
        $region76: #{tpu_custom_call.1} parent=71 // pred_fallthru
          _
        // Predicated region
        $region77: #{tpu_custom_call.1} parent=71 // pred_check
          %p2599 = pneg %p201
        $region78: #{tpu_custom_call.1} parent=71 // pred_check_branch
          %2601 = sbr.rel (%p2599) target = $region80
        $region79: #{tpu_custom_call.1} parent=71 // pred_region
          %s2602 = sand.u32 %s186, 1
          %s2603 = scalar_lea.sflag [#allocation13], %s2602
          %s2604 = sand.u32 %s186, 1
          %s2605 = smul.addr %s2604, 208
          %s2606 = scalar_lea.vmem [#allocation12], %s2605
          %2607 = dma.done %s2603, 3328
        $region80: #{tpu_custom_call.1} parent=71 // pred_fallthru
          _
      $region72: #{tpu_custom_call.1} parent=5 // pred_fallthru
        _
    $region6: #{tpu_custom_call.1} parent=1 // loop_footer
      %s30 = sadd.s32 1, %s26
    $region7: #{tpu_custom_call.1} parent=1 // loop_footer_branch
      %25 = sbr.rel target = $region3
    $region8: #{tpu_custom_call.1} parent=1 // loop_exit
      _
    %2608 = vsyncpa [#allocation3], 1
    %s2609 = scalar_lea.sflag [#allocation3], 1
    %2610 = vsyncpa %s2609, 1
    %2611 = vsyncpa [#allocation6], 1
    %s2612 = scalar_lea.sflag [#allocation6], 1
    %2613 = vsyncpa %s2612, 1
    %2614 = vsyncpa [#allocation9], 1
    %2615 = vsyncpa [#allocation4], 1
    %s2616 = scalar_lea.sflag [#allocation4], 1
    %2617 = vsyncpa %s2616, 1
    %2618 = vsyncpa [#allocation13], 1
    %s2619 = scalar_lea.sflag [#allocation13], 1
    %2620 = vsyncpa %s2619, 1

</llo_original>
